<compile_context>
chip_gen: v7x
topology: tpu7x:2x2x1
jax: 0.10.0
libtpu: 0.0.40
codegen_flags: <defaults>
</compile_context>

<pallas_src>
import jax
import jax.numpy as jnp
from jax.experimental import pallas as pl
from jax.experimental.pallas import tpu as pltpu


def _round_up(x, m):
    return ((x + m - 1) // m) * m


# --------------------------------------------------------------------------- #
# Kernel
# --------------------------------------------------------------------------- #
def _make_fused_gru_kernel(num_layers, T, tile_n, Hp, unroll):
    """Builds the kernel closing over the static layer count / loop bounds."""

    def kernel(*refs):
        # refs = x_ref, (wih, whh, b_in, b_hn) * num_layers, out_ref,
        #        gate_slab_scratch, [act_scratch if num_layers > 1]
        x_ref = refs[0]
        out_ref = refs[1 + 4 * num_layers]
        g_ref = refs[2 + 4 * num_layers]
        act_ref = refs[3 + 4 * num_layers] if num_layers > 1 else None

        for layer in range(num_layers):
            wih_ref, whh_ref, bin_ref, bhn_ref = refs[1 + 4 * layer: 5 + 4 * layer]
            src_ref = x_ref if layer == 0 else act_ref
            dst_ref = out_ref if layer == num_layers - 1 else act_ref

            # ---- Hoisted input projection for ALL timesteps (off the serial
            # path): one (T*tile_n, I) x (I, 3*Hp) bf16 matmul, all foldable
            # biases added once, stored to a single lane-dense (.., 3*Hp) slab.
            # NOTE: src_ref is read in full BEFORE the step loop writes dst_ref
            # (this ordering makes in-place act_ref reuse safe for >=3 layers).
            I_l = src_ref.shape[-1]
            x_in = src_ref[...].reshape(T * tile_n, I_l)
            gates = jnp.dot(x_in.astype(jnp.bfloat16), wih_ref[...],
                            preferred_element_type=jnp.float32) + bin_ref[...]
            g_ref[...] = gates.reshape(T, tile_n, 3 * Hp)

            # ---- Hoist recurrent weights and the n-gate hidden-bias broadcast
            # out of the (unrolled) serial loop.
            w_hh = whh_ref[...]                                   # bf16 (Hp, 3Hp)
            b_hn = jnp.broadcast_to(bhn_ref[...], (tile_n, Hp))   # f32

            def step(t, h):
                # Single fused recurrent matmul per timestep.
                gh = jnp.dot(h.astype(jnp.bfloat16), w_hh,
                             preferred_element_type=jnp.float32)  # (tile_n, 3Hp)
                g = g_ref[t]                                      # (tile_n, 3Hp)
                r = jax.nn.sigmoid(g[:, :Hp] + gh[:, :Hp])
                z = jax.nn.sigmoid(g[:, Hp:2 * Hp] + gh[:, Hp:2 * Hp])
                n = jnp.tanh(g[:, 2 * Hp:] + r * (gh[:, 2 * Hp:] + b_hn))
                h_new = (1.0 - z) * n + z * h
                dst_ref[t] = h_new                                # lane-dense store
                return h_new

            h0 = jnp.zeros((tile_n, Hp), jnp.float32)
            jax.lax.fori_loop(0, T, step, h0, unroll=unroll)

    return kernel


# --------------------------------------------------------------------------- #
# Wrapper / pallas_call plumbing
# --------------------------------------------------------------------------- #
def _tile_footprint_bytes(T, tile_n, I0, Hp, layers):
    """Approximate per-tile VMEM footprint (double-buffered I/O + weights)."""
    b = 2 * T * tile_n * I0 * 2          # bf16 x tile, double buffered
    b += 2 * T * tile_n * Hp * 4         # f32 out tile, double buffered
    b += T * tile_n * 3 * Hp * 4         # gate slab scratch
    if len(layers) > 1:
        b += T * tile_n * Hp * 4         # inter-layer activation scratch
    for p in layers:
        for a in p.values():
            b += 2 * int(a.size) * a.dtype.itemsize
    return b


def _choose_tile_n(T, n_pad, I0, Hp, layers, budget_bytes=24 << 20):
    """Largest batch tile (multiple of 16 dividing n_pad) under the budget."""
    candidates = [t for t in range(n_pad, 0, -16) if n_pad % t == 0]
    for t in candidates:
        if _tile_footprint_bytes(T, t, I0, Hp, layers) <= budget_bytes:
            return t
    return min(n_pad, 16)


def _fused_gru_pallas(x3d, layers, *, T, n_pad, Hp, tile_n):
    """x3d: (T, n_pad, I0) bfloat16. layers: prepared per-layer dicts."""
    num_layers = len(layers)
    I0 = x3d.shape[-1]
    num_tiles = n_pad // tile_n

    args = [x3d]
    in_specs = [pl.BlockSpec((T, tile_n, I0), lambda b: (0, b, 0))]
    for p in layers:
        for name in ("wih", "whh", "b_in", "b_hn"):
            a = p[name]
            args.append(a)
            # Constant index_map -> weights stay resident across batch tiles.
            in_specs.append(pl.BlockSpec(a.shape, lambda b: (0, 0)))

    out_spec = pl.BlockSpec((T, tile_n, Hp), lambda b: (0, b, 0))
    scratch = [pltpu.VMEM((T, tile_n, 3 * Hp), jnp.float32)]
    if num_layers > 1:
        scratch.append(pltpu.VMEM((T, tile_n, Hp), jnp.float32))

    unroll = max(1, min(int(T), 8))      # partial unroll: LLO visibility w/o blowup

    fp = _tile_footprint_bytes(T, tile_n, I0, Hp, layers)
    vmem_limit = int(min(96 << 20, max(32 << 20, 2 * fp + (4 << 20))))

    return pl.pallas_call(
        _make_fused_gru_kernel(num_layers, T, tile_n, Hp, unroll),
        out_shape=jax.ShapeDtypeStruct((T, n_pad, Hp), jnp.float32),
        grid_spec=pltpu.PrefetchScalarGridSpec(
            num_scalar_prefetch=0,
            grid=(num_tiles,),
            in_specs=in_specs,
            out_specs=out_spec,
            scratch_shapes=scratch,
        ),
        compiler_params=pltpu.CompilerParams(
            dimension_semantics=("parallel",),
            vmem_limit_bytes=vmem_limit,
        ),
    )(*args)


# --------------------------------------------------------------------------- #
# Parameters
# --------------------------------------------------------------------------- #
def init_gru_params(key, seq_len, pred_len, e_layers):
    """nn.GRU-shaped params, uniform(-1/sqrt(H), 1/sqrt(H)) init (deterministic)."""
    H = pred_len
    bound = 1.0 / float(jnp.sqrt(jnp.asarray(H, jnp.float32)))
    params = []
    for layer in range(e_layers):
        in_size = seq_len if layer == 0 else H
        key, k1, k2, k3, k4 = jax.random.split(key, 5)
        params.append(dict(
            w_ih=jax.random.uniform(k1, (3 * H, in_size), jnp.float32, -bound, bound),
            w_hh=jax.random.uniform(k2, (3 * H, H), jnp.float32, -bound, bound),
            b_ih=jax.random.uniform(k3, (3 * H,), jnp.float32, -bound, bound),
            b_hh=jax.random.uniform(k4, (3 * H,), jnp.float32, -bound, bound),
        ))
    return params


def prepare_gru_params(raw_params):
    """One-time conversion to the kernel layout.

    Per layer:
      wih : (I_rows, 3*Hp) bf16, gate-major columns [r | z | n], each padded to Hp
      whh : (Hp,     3*Hp) bf16
      b_in: (1, 3*Hp) f32  fused bias: [b_ir+b_hr | b_iz+b_hz | b_in]
      b_hn: (1, Hp)   f32  hidden bias of the n gate (applied inside r*(...))
    For layers > 0 the input rows are padded H -> Hp (the previous layer's
    hidden state is kept Hp wide with zero padded lanes).
    """
    prepared = []
    for layer, p in enumerate(raw_params):
        w_ih, w_hh, b_ih, b_hh = p["w_ih"], p["w_hh"], p["b_ih"], p["b_hh"]
        H = w_hh.shape[1]
        Hp = _round_up(H, 128)
        in_size = w_ih.shape[1]
        I_rows = in_size if layer == 0 else Hp

        wih_g = w_ih.reshape(3, H, in_size)
        wih_cat = jnp.concatenate(
            [jnp.pad(wih_g[g].T, ((0, I_rows - in_size), (0, Hp - H)))
             for g in range(3)], axis=1).astype(jnp.bfloat16)          # (I_rows, 3Hp)

        whh_g = w_hh.reshape(3, H, H)
        whh_cat = jnp.concatenate(
            [jnp.pad(whh_g[g].T, ((0, Hp - H), (0, Hp - H)))
             for g in range(3)], axis=1).astype(jnp.bfloat16)          # (Hp, 3Hp)

        b_ih3 = b_ih.reshape(3, H)
        b_hh3 = b_hh.reshape(3, H)
        b_r = jnp.pad(b_ih3[0] + b_hh3[0], (0, Hp - H))
        b_z = jnp.pad(b_ih3[1] + b_hh3[1], (0, Hp - H))
        b_n = jnp.pad(b_ih3[2], (0, Hp - H))
        b_in = jnp.concatenate([b_r, b_z, b_n]).reshape(1, 3 * Hp).astype(jnp.float32)
        b_hn = jnp.pad(b_hh3[2], (0, Hp - H)).reshape(1, Hp).astype(jnp.float32)

        prepared.append(dict(wih=wih_cat, whh=whh_cat, b_in=b_in, b_hn=b_hn))
    return prepared


# --------------------------------------------------------------------------- #
# Model forward (matches the PyTorch module)
# --------------------------------------------------------------------------- #
def model_forward(params, x, enc_mark=None, dec=None, dec_mark=None, *, pred_len):
    """x: (B, seq_len, enc_in) -> output: (B, pred_len, enc_in)."""
    B, seq_len, enc_in = x.shape
    H = pred_len
    Hp = params[0]["whh"].shape[0]             # padded hidden size (mult of 128)
    T, N = B, enc_in                           # GRU time axis = B, batch = enc_in
    n_pad = _round_up(N, 16)                   # bf16-safe sublane alignment
    I0 = seq_len
    tile_n = _choose_tile_n(T, n_pad, I0, Hp, params)

    # torch.transpose(x, 1, 2): (B, enc_in, seq_len) == (T, N, I0).
    # bf16 input halves the HBM->VMEM DMA; it feeds the MXU only (bf16 anyway).
    xt = jnp.transpose(x, (0, 2, 1)).astype(jnp.bfloat16)
    xt = jnp.pad(xt, ((0, 0), (0, n_pad - N), (0, 0)))

    out = _fused_gru_pallas(xt, params, T=T, n_pad=n_pad, Hp=Hp, tile_n=tile_n)

    out = out[:, :N, :H]                       # drop batch / lane padding
    return jnp.transpose(out, (0, 2, 1))       # (B, pred_len, enc_in)


# --------------------------------------------------------------------------- #
# Pure-JAX reference (PyTorch GRU semantics, f32) for verification
# --------------------------------------------------------------------------- #
def gru_reference(raw_params, x):
    h_seq = jnp.transpose(x, (0, 2, 1)).astype(jnp.float32)   # (T, N, I)
    for p in raw_params:
        w_ih, w_hh, b_ih, b_hh = p["w_ih"], p["w_hh"], p["b_ih"], p["b_hh"]
        H = w_hh.shape[1]
        N = h_seq.shape[1]

        def cell(h, x_t, w_ih=w_ih, w_hh=w_hh, b_ih=b_ih, b_hh=b_hh, H=H):
            gi = x_t @ w_ih.T + b_ih
            gh = h @ w_hh.T + b_hh
            i_r, i_z, i_n = gi[:, :H], gi[:, H:2 * H], gi[:, 2 * H:]
            h_r, h_z, h_n = gh[:, :H], gh[:, H:2 * H], gh[:, 2 * H:]
            r = jax.nn.sigmoid(i_r + h_r)
            z = jax.nn.sigmoid(i_z + h_z)
            n = jnp.tanh(i_n + r * h_n)
            h_new = (1.0 - z) * n + z * h
            return h_new, h_new

        h0 = jnp.zeros((N, H), jnp.float32)
        _, h_seq = jax.lax.scan(cell, h0, h_seq)
    return jnp.transpose(h_seq, (0, 2, 1))


if __name__ == "__main__":
    # Small config consistent with the module's forward pass.
    B, seq_len, pred_len, enc_in, e_layers = 4, 16, 8, 7, 2

    key = jax.random.PRNGKey(0)
    key, kx = jax.random.split(key)
    x = jax.random.normal(kx, (B, seq_len, enc_in), dtype=jnp.float32)
    # enc_mark / dec / dec_mark are unused by the forward pass (as in PyTorch).
    enc_mark = jnp.zeros((B, seq_len, 4), jnp.float32)
    dec = jnp.zeros((B, pred_len, enc_in), jnp.float32)
    dec_mark = jnp.zeros((B, pred_len, 4), jnp.float32)

    raw_params = init_gru_params(key, seq_len, pred_len, e_layers)
    params = prepare_gru_params(raw_params)     # one-time layout prep

    fwd = jax.jit(model_forward, static_argnames=("pred_len",))
    out = fwd(params, x, enc_mark, dec, dec_mark, pred_len=pred_len)
    out = jax.block_until_ready(out)
    assert out.shape == (B, pred_len, enc_in), out.shape

    ref = jax.block_until_ready(gru_reference(raw_params, x))
    # bf16 MXU operands vs f32 reference -> loosened tolerance.
    assert jnp.allclose(out, ref, atol=3e-2, rtol=3e-2), \
        float(jnp.max(jnp.abs(out - ref)))

    print("KERNEL_OK")
</pallas_src>

<mosaic_0001>
module attributes {stable_mosaic.version = 11 : i64} {
  func.func @kernel(%arg0: i32, %arg1: memref<4x16x16xbf16, #tpu.memory_space<vmem>>, %arg2: memref<16x384xbf16, #tpu.memory_space<vmem>>, %arg3: memref<128x384xbf16, #tpu.memory_space<vmem>>, %arg4: memref<1x384xf32, #tpu.memory_space<vmem>>, %arg5: memref<1x128xf32, #tpu.memory_space<vmem>>, %arg6: memref<128x384xbf16, #tpu.memory_space<vmem>>, %arg7: memref<128x384xbf16, #tpu.memory_space<vmem>>, %arg8: memref<1x384xf32, #tpu.memory_space<vmem>>, %arg9: memref<1x128xf32, #tpu.memory_space<vmem>>, %arg10: memref<4x16x128xf32, #tpu.memory_space<vmem>>, %arg11: memref<4x16x384xf32, #tpu.memory_space<vmem>>, %arg12: memref<4x16x128xf32, #tpu.memory_space<vmem>>) attributes {dimension_semantics = [#tpu.dimension_semantics<parallel>], iteration_bounds = array<i64: 1>, scalar_prefetch = 0 : i64, scratch_operands = 2 : i64, tpu.core_type = #tpu.core_type<tc>, window_params = [{transform_indices = @transform_0, window_bounds = array<i64: 4, 16, 16>}, {pipeline_mode = #tpu.pipeline_mode<synchronous>, transform_indices = @transform_1, window_bounds = array<i64: 16, 384>}, {pipeline_mode = #tpu.pipeline_mode<synchronous>, transform_indices = @transform_2, window_bounds = array<i64: 128, 384>}, {pipeline_mode = #tpu.pipeline_mode<synchronous>, transform_indices = @transform_3, window_bounds = array<i64: 1, 384>}, {pipeline_mode = #tpu.pipeline_mode<synchronous>, transform_indices = @transform_4, window_bounds = array<i64: 1, 128>}, {pipeline_mode = #tpu.pipeline_mode<synchronous>, transform_indices = @transform_5, window_bounds = array<i64: 128, 384>}, {pipeline_mode = #tpu.pipeline_mode<synchronous>, transform_indices = @transform_6, window_bounds = array<i64: 128, 384>}, {pipeline_mode = #tpu.pipeline_mode<synchronous>, transform_indices = @transform_7, window_bounds = array<i64: 1, 384>}, {pipeline_mode = #tpu.pipeline_mode<synchronous>, transform_indices = @transform_8, window_bounds = array<i64: 1, 128>}, {transform_indices = @transform_9, window_bounds = array<i64: 4, 16, 128>}]} {
    %c0 = arith.constant 0 : index
    %c0_0 = arith.constant 0 : index
    %c0_1 = arith.constant 0 : index
    %0 = vector.load %arg1[%c0, %c0_0, %c0_1] : memref<4x16x16xbf16, #tpu.memory_space<vmem>>, vector<4x16x16xbf16>
    %1 = vector.shape_cast %0 : vector<4x16x16xbf16> to vector<64x16xbf16>
    %c0_2 = arith.constant 0 : index
    %c0_3 = arith.constant 0 : index
    %2 = vector.load %arg2[%c0_2, %c0_3] : memref<16x384xbf16, #tpu.memory_space<vmem>>, vector<16x384xbf16>
    %cst = arith.constant dense<0.000000e+00> : vector<64x384xf32>
    %3 = tpu.matmul %1, %2, %cst {dimension_numbers = #tpu.dot_dimension_numbers<[1], [0], [0], [1], [0, 0, 1, 1], [], []>} : vector<64x16xbf16>, vector<16x384xbf16>, vector<64x384xf32> -> vector<64x384xf32>
    %c0_4 = arith.constant 0 : index
    %c0_5 = arith.constant 0 : index
    %4 = vector.load %arg4[%c0_4, %c0_5] : memref<1x384xf32, #tpu.memory_space<vmem>>, vector<1x384xf32>
    %5 = vector.broadcast %4 : vector<1x384xf32> to vector<64x384xf32>
    %6 = arith.addf %3, %5 : vector<64x384xf32>
    %7 = vector.shape_cast %6 : vector<64x384xf32> to vector<4x16x384xf32>
    %c0_6 = arith.constant 0 : index
    %c0_7 = arith.constant 0 : index
    %c0_8 = arith.constant 0 : index
    %8 = vector.load %arg11[%c0_6, %c0_7, %c0_8] : memref<4x16x384xf32, #tpu.memory_space<vmem>>, vector<4x16x384xf32>
    tpu.vector_store %arg11[%c0_6, %c0_7, %c0_8], %7 {strides = array<i32>} : memref<4x16x384xf32, #tpu.memory_space<vmem>>, vector<4x16x384xf32>,
    %c0_9 = arith.constant 0 : index
    %c0_10 = arith.constant 0 : index
    %9 = vector.load %arg3[%c0_9, %c0_10] : memref<128x384xbf16, #tpu.memory_space<vmem>>, vector<128x384xbf16>
    %c0_11 = arith.constant 0 : index
    %c0_12 = arith.constant 0 : index
    %10 = vector.load %arg5[%c0_11, %c0_12] : memref<1x128xf32, #tpu.memory_space<vmem>>, vector<1x128xf32>
    %11 = vector.shape_cast %10 : vector<1x128xf32> to vector<1x128xf32>
    %12 = vector.broadcast %11 : vector<1x128xf32> to vector<16x128xf32>
    %cst_13 = arith.constant 0.000000e+00 : f32
    %13 = vector.broadcast %cst_13 : f32 to vector<16x128xf32>
    %c0_i32 = arith.constant 0 : i32
    %14 = arith.truncf %13 : vector<16x128xf32> to vector<16x128xbf16>
    %cst_14 = arith.constant dense<0.000000e+00> : vector<16x384xf32>
    %15 = tpu.matmul %14, %9, %cst_14 {dimension_numbers = #tpu.dot_dimension_numbers<[1], [0], [0], [1], [0, 0, 1, 1], [], []>} : vector<16x128xbf16>, vector<128x384xbf16>, vector<16x384xf32> -> vector<16x384xf32>
    %16 = arith.index_cast %c0_i32 : i32 to index
    %c0_15 = arith.constant 0 : index
    %c0_16 = arith.constant 0 : index
    %17 = vector.load %arg11[%16, %c0_15, %c0_16] : memref<4x16x384xf32, #tpu.memory_space<vmem>>, vector<1x16x384xf32>
    %18 = vector.shape_cast %17 : vector<1x16x384xf32> to vector<16x384xf32>
    %19 = vector.extract_strided_slice %18 {offsets = [0, 0], sizes = [16, 128], strides = [1, 1]} : vector<16x384xf32> to vector<16x128xf32>
    %20 = vector.extract_strided_slice %15 {offsets = [0, 0], sizes = [16, 128], strides = [1, 1]} : vector<16x384xf32> to vector<16x128xf32>
    %21 = arith.addf %19, %20 : vector<16x128xf32>
    %22 = arith.negf %21 : vector<16x128xf32>
    %23 = math.exp %22 : vector<16x128xf32>
    %cst_17 = arith.constant 1.000000e+00 : f32
    %24 = vector.broadcast %cst_17 : f32 to vector<16x128xf32>
    %25 = arith.addf %24, %23 : vector<16x128xf32>
    %26 = arith.divf %24, %25 : vector<16x128xf32>
    %27 = vector.extract_strided_slice %18 {offsets = [0, 128], sizes = [16, 128], strides = [1, 1]} : vector<16x384xf32> to vector<16x128xf32>
    %28 = vector.extract_strided_slice %15 {offsets = [0, 128], sizes = [16, 128], strides = [1, 1]} : vector<16x384xf32> to vector<16x128xf32>
    %29 = arith.addf %27, %28 : vector<16x128xf32>
    %30 = arith.negf %29 : vector<16x128xf32>
    %31 = math.exp %30 : vector<16x128xf32>
    %cst_18 = arith.constant 1.000000e+00 : f32
    %32 = vector.broadcast %cst_18 : f32 to vector<16x128xf32>
    %33 = arith.addf %32, %31 : vector<16x128xf32>
    %34 = arith.divf %32, %33 : vector<16x128xf32>
    %35 = vector.extract_strided_slice %18 {offsets = [0, 256], sizes = [16, 128], strides = [1, 1]} : vector<16x384xf32> to vector<16x128xf32>
    %36 = vector.extract_strided_slice %15 {offsets = [0, 256], sizes = [16, 128], strides = [1, 1]} : vector<16x384xf32> to vector<16x128xf32>
    %37 = arith.addf %36, %12 : vector<16x128xf32>
    %38 = arith.mulf %26, %37 : vector<16x128xf32>
    %39 = arith.addf %35, %38 : vector<16x128xf32>
    %40 = math.tanh %39 : vector<16x128xf32>
    %cst_19 = arith.constant 1.000000e+00 : f32
    %41 = vector.broadcast %cst_19 : f32 to vector<16x128xf32>
    %42 = arith.subf %41, %34 : vector<16x128xf32>
    %43 = arith.mulf %42, %40 : vector<16x128xf32>
    %44 = arith.mulf %34, %13 : vector<16x128xf32>
    %45 = arith.addf %43, %44 : vector<16x128xf32>
    %46 = arith.index_cast %c0_i32 : i32 to index
    %c0_20 = arith.constant 0 : index
    %c0_21 = arith.constant 0 : index
    %47 = vector.load %arg12[%46, %c0_20, %c0_21] : memref<4x16x128xf32, #tpu.memory_space<vmem>>, vector<1x16x128xf32>
    %48 = vector.shape_cast %47 : vector<1x16x128xf32> to vector<16x128xf32>
    %49 = vector.shape_cast %45 : vector<16x128xf32> to vector<1x16x128xf32>
    tpu.vector_store %arg12[%46, %c0_20, %c0_21], %49 {strides = array<i32>} : memref<4x16x128xf32, #tpu.memory_space<vmem>>, vector<1x16x128xf32>,
    %c1_i32 = arith.constant 1 : i32
    %50 = arith.truncf %45 : vector<16x128xf32> to vector<16x128xbf16>
    %cst_22 = arith.constant dense<0.000000e+00> : vector<16x384xf32>
    %51 = tpu.matmul %50, %9, %cst_22 {dimension_numbers = #tpu.dot_dimension_numbers<[1], [0], [0], [1], [0, 0, 1, 1], [], []>} : vector<16x128xbf16>, vector<128x384xbf16>, vector<16x384xf32> -> vector<16x384xf32>
    %52 = arith.index_cast %c1_i32 : i32 to index
    %c0_23 = arith.constant 0 : index
    %c0_24 = arith.constant 0 : index
    %53 = vector.load %arg11[%52, %c0_23, %c0_24] : memref<4x16x384xf32, #tpu.memory_space<vmem>>, vector<1x16x384xf32>
    %54 = vector.shape_cast %53 : vector<1x16x384xf32> to vector<16x384xf32>
    %55 = vector.extract_strided_slice %54 {offsets = [0, 0], sizes = [16, 128], strides = [1, 1]} : vector<16x384xf32> to vector<16x128xf32>
    %56 = vector.extract_strided_slice %51 {offsets = [0, 0], sizes = [16, 128], strides = [1, 1]} : vector<16x384xf32> to vector<16x128xf32>
    %57 = arith.addf %55, %56 : vector<16x128xf32>
    %58 = arith.negf %57 : vector<16x128xf32>
    %59 = math.exp %58 : vector<16x128xf32>
    %cst_25 = arith.constant 1.000000e+00 : f32
    %60 = vector.broadcast %cst_25 : f32 to vector<16x128xf32>
    %61 = arith.addf %60, %59 : vector<16x128xf32>
    %62 = arith.divf %60, %61 : vector<16x128xf32>
    %63 = vector.extract_strided_slice %54 {offsets = [0, 128], sizes = [16, 128], strides = [1, 1]} : vector<16x384xf32> to vector<16x128xf32>
    %64 = vector.extract_strided_slice %51 {offsets = [0, 128], sizes = [16, 128], strides = [1, 1]} : vector<16x384xf32> to vector<16x128xf32>
    %65 = arith.addf %63, %64 : vector<16x128xf32>
    %66 = arith.negf %65 : vector<16x128xf32>
    %67 = math.exp %66 : vector<16x128xf32>
    %cst_26 = arith.constant 1.000000e+00 : f32
    %68 = vector.broadcast %cst_26 : f32 to vector<16x128xf32>
    %69 = arith.addf %68, %67 : vector<16x128xf32>
    %70 = arith.divf %68, %69 : vector<16x128xf32>
    %71 = vector.extract_strided_slice %54 {offsets = [0, 256], sizes = [16, 128], strides = [1, 1]} : vector<16x384xf32> to vector<16x128xf32>
    %72 = vector.extract_strided_slice %51 {offsets = [0, 256], sizes = [16, 128], strides = [1, 1]} : vector<16x384xf32> to vector<16x128xf32>
    %73 = arith.addf %72, %12 : vector<16x128xf32>
    %74 = arith.mulf %62, %73 : vector<16x128xf32>
    %75 = arith.addf %71, %74 : vector<16x128xf32>
    %76 = math.tanh %75 : vector<16x128xf32>
    %cst_27 = arith.constant 1.000000e+00 : f32
    %77 = vector.broadcast %cst_27 : f32 to vector<16x128xf32>
    %78 = arith.subf %77, %70 : vector<16x128xf32>
    %79 = arith.mulf %78, %76 : vector<16x128xf32>
    %80 = arith.mulf %70, %45 : vector<16x128xf32>
    %81 = arith.addf %79, %80 : vector<16x128xf32>
    %82 = arith.index_cast %c1_i32 : i32 to index
    %c0_28 = arith.constant 0 : index
    %c0_29 = arith.constant 0 : index
    %83 = vector.load %arg12[%82, %c0_28, %c0_29] : memref<4x16x128xf32, #tpu.memory_space<vmem>>, vector<1x16x128xf32>
    %84 = vector.shape_cast %83 : vector<1x16x128xf32> to vector<16x128xf32>
    %85 = vector.shape_cast %81 : vector<16x128xf32> to vector<1x16x128xf32>
    tpu.vector_store %arg12[%82, %c0_28, %c0_29], %85 {strides = array<i32>} : memref<4x16x128xf32, #tpu.memory_space<vmem>>, vector<1x16x128xf32>,
    %c2_i32 = arith.constant 2 : i32
    %86 = arith.truncf %81 : vector<16x128xf32> to vector<16x128xbf16>
    %cst_30 = arith.constant dense<0.000000e+00> : vector<16x384xf32>
    %87 = tpu.matmul %86, %9, %cst_30 {dimension_numbers = #tpu.dot_dimension_numbers<[1], [0], [0], [1], [0, 0, 1, 1], [], []>} : vector<16x128xbf16>, vector<128x384xbf16>, vector<16x384xf32> -> vector<16x384xf32>
    %88 = arith.index_cast %c2_i32 : i32 to index
    %c0_31 = arith.constant 0 : index
    %c0_32 = arith.constant 0 : index
    %89 = vector.load %arg11[%88, %c0_31, %c0_32] : memref<4x16x384xf32, #tpu.memory_space<vmem>>, vector<1x16x384xf32>
    %90 = vector.shape_cast %89 : vector<1x16x384xf32> to vector<16x384xf32>
    %91 = vector.extract_strided_slice %90 {offsets = [0, 0], sizes = [16, 128], strides = [1, 1]} : vector<16x384xf32> to vector<16x128xf32>
    %92 = vector.extract_strided_slice %87 {offsets = [0, 0], sizes = [16, 128], strides = [1, 1]} : vector<16x384xf32> to vector<16x128xf32>
    %93 = arith.addf %91, %92 : vector<16x128xf32>
    %94 = arith.negf %93 : vector<16x128xf32>
    %95 = math.exp %94 : vector<16x128xf32>
    %cst_33 = arith.constant 1.000000e+00 : f32
    %96 = vector.broadcast %cst_33 : f32 to vector<16x128xf32>
    %97 = arith.addf %96, %95 : vector<16x128xf32>
    %98 = arith.divf %96, %97 : vector<16x128xf32>
    %99 = vector.extract_strided_slice %90 {offsets = [0, 128], sizes = [16, 128], strides = [1, 1]} : vector<16x384xf32> to vector<16x128xf32>
    %100 = vector.extract_strided_slice %87 {offsets = [0, 128], sizes = [16, 128], strides = [1, 1]} : vector<16x384xf32> to vector<16x128xf32>
    %101 = arith.addf %99, %100 : vector<16x128xf32>
    %102 = arith.negf %101 : vector<16x128xf32>
    %103 = math.exp %102 : vector<16x128xf32>
    %cst_34 = arith.constant 1.000000e+00 : f32
    %104 = vector.broadcast %cst_34 : f32 to vector<16x128xf32>
    %105 = arith.addf %104, %103 : vector<16x128xf32>
    %106 = arith.divf %104, %105 : vector<16x128xf32>
    %107 = vector.extract_strided_slice %90 {offsets = [0, 256], sizes = [16, 128], strides = [1, 1]} : vector<16x384xf32> to vector<16x128xf32>
    %108 = vector.extract_strided_slice %87 {offsets = [0, 256], sizes = [16, 128], strides = [1, 1]} : vector<16x384xf32> to vector<16x128xf32>
    %109 = arith.addf %108, %12 : vector<16x128xf32>
    %110 = arith.mulf %98, %109 : vector<16x128xf32>
    %111 = arith.addf %107, %110 : vector<16x128xf32>
    %112 = math.tanh %111 : vector<16x128xf32>
    %cst_35 = arith.constant 1.000000e+00 : f32
    %113 = vector.broadcast %cst_35 : f32 to vector<16x128xf32>
    %114 = arith.subf %113, %106 : vector<16x128xf32>
    %115 = arith.mulf %114, %112 : vector<16x128xf32>
    %116 = arith.mulf %106, %81 : vector<16x128xf32>
    %117 = arith.addf %115, %116 : vector<16x128xf32>
    %118 = arith.index_cast %c2_i32 : i32 to index
    %c0_36 = arith.constant 0 : index
    %c0_37 = arith.constant 0 : index
    %119 = vector.load %arg12[%118, %c0_36, %c0_37] : memref<4x16x128xf32, #tpu.memory_space<vmem>>, vector<1x16x128xf32>
    %120 = vector.shape_cast %119 : vector<1x16x128xf32> to vector<16x128xf32>
    %121 = vector.shape_cast %117 : vector<16x128xf32> to vector<1x16x128xf32>
    tpu.vector_store %arg12[%118, %c0_36, %c0_37], %121 {strides = array<i32>} : memref<4x16x128xf32, #tpu.memory_space<vmem>>, vector<1x16x128xf32>,
    %c3_i32 = arith.constant 3 : i32
    %122 = arith.truncf %117 : vector<16x128xf32> to vector<16x128xbf16>
    %cst_38 = arith.constant dense<0.000000e+00> : vector<16x384xf32>
    %123 = tpu.matmul %122, %9, %cst_38 {dimension_numbers = #tpu.dot_dimension_numbers<[1], [0], [0], [1], [0, 0, 1, 1], [], []>} : vector<16x128xbf16>, vector<128x384xbf16>, vector<16x384xf32> -> vector<16x384xf32>
    %124 = arith.index_cast %c3_i32 : i32 to index
    %c0_39 = arith.constant 0 : index
    %c0_40 = arith.constant 0 : index
    %125 = vector.load %arg11[%124, %c0_39, %c0_40] : memref<4x16x384xf32, #tpu.memory_space<vmem>>, vector<1x16x384xf32>
    %126 = vector.shape_cast %125 : vector<1x16x384xf32> to vector<16x384xf32>
    %127 = vector.extract_strided_slice %126 {offsets = [0, 0], sizes = [16, 128], strides = [1, 1]} : vector<16x384xf32> to vector<16x128xf32>
    %128 = vector.extract_strided_slice %123 {offsets = [0, 0], sizes = [16, 128], strides = [1, 1]} : vector<16x384xf32> to vector<16x128xf32>
    %129 = arith.addf %127, %128 : vector<16x128xf32>
    %130 = arith.negf %129 : vector<16x128xf32>
    %131 = math.exp %130 : vector<16x128xf32>
    %cst_41 = arith.constant 1.000000e+00 : f32
    %132 = vector.broadcast %cst_41 : f32 to vector<16x128xf32>
    %133 = arith.addf %132, %131 : vector<16x128xf32>
    %134 = arith.divf %132, %133 : vector<16x128xf32>
    %135 = vector.extract_strided_slice %126 {offsets = [0, 128], sizes = [16, 128], strides = [1, 1]} : vector<16x384xf32> to vector<16x128xf32>
    %136 = vector.extract_strided_slice %123 {offsets = [0, 128], sizes = [16, 128], strides = [1, 1]} : vector<16x384xf32> to vector<16x128xf32>
    %137 = arith.addf %135, %136 : vector<16x128xf32>
    %138 = arith.negf %137 : vector<16x128xf32>
    %139 = math.exp %138 : vector<16x128xf32>
    %cst_42 = arith.constant 1.000000e+00 : f32
    %140 = vector.broadcast %cst_42 : f32 to vector<16x128xf32>
    %141 = arith.addf %140, %139 : vector<16x128xf32>
    %142 = arith.divf %140, %141 : vector<16x128xf32>
    %143 = vector.extract_strided_slice %126 {offsets = [0, 256], sizes = [16, 128], strides = [1, 1]} : vector<16x384xf32> to vector<16x128xf32>
    %144 = vector.extract_strided_slice %123 {offsets = [0, 256], sizes = [16, 128], strides = [1, 1]} : vector<16x384xf32> to vector<16x128xf32>
    %145 = arith.addf %144, %12 : vector<16x128xf32>
    %146 = arith.mulf %134, %145 : vector<16x128xf32>
    %147 = arith.addf %143, %146 : vector<16x128xf32>
    %148 = math.tanh %147 : vector<16x128xf32>
    %cst_43 = arith.constant 1.000000e+00 : f32
    %149 = vector.broadcast %cst_43 : f32 to vector<16x128xf32>
    %150 = arith.subf %149, %142 : vector<16x128xf32>
    %151 = arith.mulf %150, %148 : vector<16x128xf32>
    %152 = arith.mulf %142, %117 : vector<16x128xf32>
    %153 = arith.addf %151, %152 : vector<16x128xf32>
    %154 = arith.index_cast %c3_i32 : i32 to index
    %c0_44 = arith.constant 0 : index
    %c0_45 = arith.constant 0 : index
    %155 = vector.load %arg12[%154, %c0_44, %c0_45] : memref<4x16x128xf32, #tpu.memory_space<vmem>>, vector<1x16x128xf32>
    %156 = vector.shape_cast %155 : vector<1x16x128xf32> to vector<16x128xf32>
    %157 = vector.shape_cast %153 : vector<16x128xf32> to vector<1x16x128xf32>
    tpu.vector_store %arg12[%154, %c0_44, %c0_45], %157 {strides = array<i32>} : memref<4x16x128xf32, #tpu.memory_space<vmem>>, vector<1x16x128xf32>,
    %c4_i32 = arith.constant 4 : i32
    %c0_46 = arith.constant 0 : index
    %c0_47 = arith.constant 0 : index
    %c0_48 = arith.constant 0 : index
    %158 = vector.load %arg12[%c0_46, %c0_47, %c0_48] : memref<4x16x128xf32, #tpu.memory_space<vmem>>, vector<4x16x128xf32>
    %159 = vector.shape_cast %158 : vector<4x16x128xf32> to vector<64x128xf32>
    %160 = arith.truncf %159 : vector<64x128xf32> to vector<64x128xbf16>
    %c0_49 = arith.constant 0 : index
    %c0_50 = arith.constant 0 : index
    %161 = vector.load %arg6[%c0_49, %c0_50] : memref<128x384xbf16, #tpu.memory_space<vmem>>, vector<128x384xbf16>
    %cst_51 = arith.constant dense<0.000000e+00> : vector<64x384xf32>
    %162 = tpu.matmul %160, %161, %cst_51 {dimension_numbers = #tpu.dot_dimension_numbers<[1], [0], [0], [1], [0, 0, 1, 1], [], []>} : vector<64x128xbf16>, vector<128x384xbf16>, vector<64x384xf32> -> vector<64x384xf32>
    %c0_52 = arith.constant 0 : index
    %c0_53 = arith.constant 0 : index
    %163 = vector.load %arg8[%c0_52, %c0_53] : memref<1x384xf32, #tpu.memory_space<vmem>>, vector<1x384xf32>
    %164 = vector.broadcast %163 : vector<1x384xf32> to vector<64x384xf32>
    %165 = arith.addf %162, %164 : vector<64x384xf32>
    %166 = vector.shape_cast %165 : vector<64x384xf32> to vector<4x16x384xf32>
    %c0_54 = arith.constant 0 : index
    %c0_55 = arith.constant 0 : index
    %c0_56 = arith.constant 0 : index
    %167 = vector.load %arg11[%c0_54, %c0_55, %c0_56] : memref<4x16x384xf32, #tpu.memory_space<vmem>>, vector<4x16x384xf32>
    tpu.vector_store %arg11[%c0_54, %c0_55, %c0_56], %166 {strides = array<i32>} : memref<4x16x384xf32, #tpu.memory_space<vmem>>, vector<4x16x384xf32>,
    %c0_57 = arith.constant 0 : index
    %c0_58 = arith.constant 0 : index
    %168 = vector.load %arg7[%c0_57, %c0_58] : memref<128x384xbf16, #tpu.memory_space<vmem>>, vector<128x384xbf16>
    %c0_59 = arith.constant 0 : index
    %c0_60 = arith.constant 0 : index
    %169 = vector.load %arg9[%c0_59, %c0_60] : memref<1x128xf32, #tpu.memory_space<vmem>>, vector<1x128xf32>
    %170 = vector.shape_cast %169 : vector<1x128xf32> to vector<1x128xf32>
    %171 = vector.broadcast %170 : vector<1x128xf32> to vector<16x128xf32>
    %cst_61 = arith.constant 0.000000e+00 : f32
    %172 = vector.broadcast %cst_61 : f32 to vector<16x128xf32>
    %c0_i32_62 = arith.constant 0 : i32
    %173 = arith.truncf %172 : vector<16x128xf32> to vector<16x128xbf16>
    %cst_63 = arith.constant dense<0.000000e+00> : vector<16x384xf32>
    %174 = tpu.matmul %173, %168, %cst_63 {dimension_numbers = #tpu.dot_dimension_numbers<[1], [0], [0], [1], [0, 0, 1, 1], [], []>} : vector<16x128xbf16>, vector<128x384xbf16>, vector<16x384xf32> -> vector<16x384xf32>
    %175 = arith.index_cast %c0_i32_62 : i32 to index
    %c0_64 = arith.constant 0 : index
    %c0_65 = arith.constant 0 : index
    %176 = vector.load %arg11[%175, %c0_64, %c0_65] : memref<4x16x384xf32, #tpu.memory_space<vmem>>, vector<1x16x384xf32>
    %177 = vector.shape_cast %176 : vector<1x16x384xf32> to vector<16x384xf32>
    %178 = vector.extract_strided_slice %177 {offsets = [0, 0], sizes = [16, 128], strides = [1, 1]} : vector<16x384xf32> to vector<16x128xf32>
    %179 = vector.extract_strided_slice %174 {offsets = [0, 0], sizes = [16, 128], strides = [1, 1]} : vector<16x384xf32> to vector<16x128xf32>
    %180 = arith.addf %178, %179 : vector<16x128xf32>
    %181 = arith.negf %180 : vector<16x128xf32>
    %182 = math.exp %181 : vector<16x128xf32>
    %cst_66 = arith.constant 1.000000e+00 : f32
    %183 = vector.broadcast %cst_66 : f32 to vector<16x128xf32>
    %184 = arith.addf %183, %182 : vector<16x128xf32>
    %185 = arith.divf %183, %184 : vector<16x128xf32>
    %186 = vector.extract_strided_slice %177 {offsets = [0, 128], sizes = [16, 128], strides = [1, 1]} : vector<16x384xf32> to vector<16x128xf32>
    %187 = vector.extract_strided_slice %174 {offsets = [0, 128], sizes = [16, 128], strides = [1, 1]} : vector<16x384xf32> to vector<16x128xf32>
    %188 = arith.addf %186, %187 : vector<16x128xf32>
    %189 = arith.negf %188 : vector<16x128xf32>
    %190 = math.exp %189 : vector<16x128xf32>
    %cst_67 = arith.constant 1.000000e+00 : f32
    %191 = vector.broadcast %cst_67 : f32 to vector<16x128xf32>
    %192 = arith.addf %191, %190 : vector<16x128xf32>
    %193 = arith.divf %191, %192 : vector<16x128xf32>
    %194 = vector.extract_strided_slice %177 {offsets = [0, 256], sizes = [16, 128], strides = [1, 1]} : vector<16x384xf32> to vector<16x128xf32>
    %195 = vector.extract_strided_slice %174 {offsets = [0, 256], sizes = [16, 128], strides = [1, 1]} : vector<16x384xf32> to vector<16x128xf32>
    %196 = arith.addf %195, %171 : vector<16x128xf32>
    %197 = arith.mulf %185, %196 : vector<16x128xf32>
    %198 = arith.addf %194, %197 : vector<16x128xf32>
    %199 = math.tanh %198 : vector<16x128xf32>
    %cst_68 = arith.constant 1.000000e+00 : f32
    %200 = vector.broadcast %cst_68 : f32 to vector<16x128xf32>
    %201 = arith.subf %200, %193 : vector<16x128xf32>
    %202 = arith.mulf %201, %199 : vector<16x128xf32>
    %203 = arith.mulf %193, %172 : vector<16x128xf32>
    %204 = arith.addf %202, %203 : vector<16x128xf32>
    %205 = arith.index_cast %c0_i32_62 : i32 to index
    %c0_69 = arith.constant 0 : index
    %c0_70 = arith.constant 0 : index
    %206 = vector.load %arg10[%205, %c0_69, %c0_70] : memref<4x16x128xf32, #tpu.memory_space<vmem>>, vector<1x16x128xf32>
    %207 = vector.shape_cast %206 : vector<1x16x128xf32> to vector<16x128xf32>
    %208 = vector.shape_cast %204 : vector<16x128xf32> to vector<1x16x128xf32>
    tpu.vector_store %arg10[%205, %c0_69, %c0_70], %208 {strides = array<i32>} : memref<4x16x128xf32, #tpu.memory_space<vmem>>, vector<1x16x128xf32>,
    %c1_i32_71 = arith.constant 1 : i32
    %209 = arith.truncf %204 : vector<16x128xf32> to vector<16x128xbf16>
    %cst_72 = arith.constant dense<0.000000e+00> : vector<16x384xf32>
    %210 = tpu.matmul %209, %168, %cst_72 {dimension_numbers = #tpu.dot_dimension_numbers<[1], [0], [0], [1], [0, 0, 1, 1], [], []>} : vector<16x128xbf16>, vector<128x384xbf16>, vector<16x384xf32> -> vector<16x384xf32>
    %211 = arith.index_cast %c1_i32_71 : i32 to index
    %c0_73 = arith.constant 0 : index
    %c0_74 = arith.constant 0 : index
    %212 = vector.load %arg11[%211, %c0_73, %c0_74] : memref<4x16x384xf32, #tpu.memory_space<vmem>>, vector<1x16x384xf32>
    %213 = vector.shape_cast %212 : vector<1x16x384xf32> to vector<16x384xf32>
    %214 = vector.extract_strided_slice %213 {offsets = [0, 0], sizes = [16, 128], strides = [1, 1]} : vector<16x384xf32> to vector<16x128xf32>
    %215 = vector.extract_strided_slice %210 {offsets = [0, 0], sizes = [16, 128], strides = [1, 1]} : vector<16x384xf32> to vector<16x128xf32>
    %216 = arith.addf %214, %215 : vector<16x128xf32>
    %217 = arith.negf %216 : vector<16x128xf32>
    %218 = math.exp %217 : vector<16x128xf32>
    %cst_75 = arith.constant 1.000000e+00 : f32
    %219 = vector.broadcast %cst_75 : f32 to vector<16x128xf32>
    %220 = arith.addf %219, %218 : vector<16x128xf32>
    %221 = arith.divf %219, %220 : vector<16x128xf32>
    %222 = vector.extract_strided_slice %213 {offsets = [0, 128], sizes = [16, 128], strides = [1, 1]} : vector<16x384xf32> to vector<16x128xf32>
    %223 = vector.extract_strided_slice %210 {offsets = [0, 128], sizes = [16, 128], strides = [1, 1]} : vector<16x384xf32> to vector<16x128xf32>
    %224 = arith.addf %222, %223 : vector<16x128xf32>
    %225 = arith.negf %224 : vector<16x128xf32>
    %226 = math.exp %225 : vector<16x128xf32>
    %cst_76 = arith.constant 1.000000e+00 : f32
    %227 = vector.broadcast %cst_76 : f32 to vector<16x128xf32>
    %228 = arith.addf %227, %226 : vector<16x128xf32>
    %229 = arith.divf %227, %228 : vector<16x128xf32>
    %230 = vector.extract_strided_slice %213 {offsets = [0, 256], sizes = [16, 128], strides = [1, 1]} : vector<16x384xf32> to vector<16x128xf32>
    %231 = vector.extract_strided_slice %210 {offsets = [0, 256], sizes = [16, 128], strides = [1, 1]} : vector<16x384xf32> to vector<16x128xf32>
    %232 = arith.addf %231, %171 : vector<16x128xf32>
    %233 = arith.mulf %221, %232 : vector<16x128xf32>
    %234 = arith.addf %230, %233 : vector<16x128xf32>
    %235 = math.tanh %234 : vector<16x128xf32>
    %cst_77 = arith.constant 1.000000e+00 : f32
    %236 = vector.broadcast %cst_77 : f32 to vector<16x128xf32>
    %237 = arith.subf %236, %229 : vector<16x128xf32>
    %238 = arith.mulf %237, %235 : vector<16x128xf32>
    %239 = arith.mulf %229, %204 : vector<16x128xf32>
    %240 = arith.addf %238, %239 : vector<16x128xf32>
    %241 = arith.index_cast %c1_i32_71 : i32 to index
    %c0_78 = arith.constant 0 : index
    %c0_79 = arith.constant 0 : index
    %242 = vector.load %arg10[%241, %c0_78, %c0_79] : memref<4x16x128xf32, #tpu.memory_space<vmem>>, vector<1x16x128xf32>
    %243 = vector.shape_cast %242 : vector<1x16x128xf32> to vector<16x128xf32>
    %244 = vector.shape_cast %240 : vector<16x128xf32> to vector<1x16x128xf32>
    tpu.vector_store %arg10[%241, %c0_78, %c0_79], %244 {strides = array<i32>} : memref<4x16x128xf32, #tpu.memory_space<vmem>>, vector<1x16x128xf32>,
    %c2_i32_80 = arith.constant 2 : i32
    %245 = arith.truncf %240 : vector<16x128xf32> to vector<16x128xbf16>
    %cst_81 = arith.constant dense<0.000000e+00> : vector<16x384xf32>
    %246 = tpu.matmul %245, %168, %cst_81 {dimension_numbers = #tpu.dot_dimension_numbers<[1], [0], [0], [1], [0, 0, 1, 1], [], []>} : vector<16x128xbf16>, vector<128x384xbf16>, vector<16x384xf32> -> vector<16x384xf32>
    %247 = arith.index_cast %c2_i32_80 : i32 to index
    %c0_82 = arith.constant 0 : index
    %c0_83 = arith.constant 0 : index
    %248 = vector.load %arg11[%247, %c0_82, %c0_83] : memref<4x16x384xf32, #tpu.memory_space<vmem>>, vector<1x16x384xf32>
    %249 = vector.shape_cast %248 : vector<1x16x384xf32> to vector<16x384xf32>
    %250 = vector.extract_strided_slice %249 {offsets = [0, 0], sizes = [16, 128], strides = [1, 1]} : vector<16x384xf32> to vector<16x128xf32>
    %251 = vector.extract_strided_slice %246 {offsets = [0, 0], sizes = [16, 128], strides = [1, 1]} : vector<16x384xf32> to vector<16x128xf32>
    %252 = arith.addf %250, %251 : vector<16x128xf32>
    %253 = arith.negf %252 : vector<16x128xf32>
    %254 = math.exp %253 : vector<16x128xf32>
    %cst_84 = arith.constant 1.000000e+00 : f32
    %255 = vector.broadcast %cst_84 : f32 to vector<16x128xf32>
    %256 = arith.addf %255, %254 : vector<16x128xf32>
    %257 = arith.divf %255, %256 : vector<16x128xf32>
    %258 = vector.extract_strided_slice %249 {offsets = [0, 128], sizes = [16, 128], strides = [1, 1]} : vector<16x384xf32> to vector<16x128xf32>
    %259 = vector.extract_strided_slice %246 {offsets = [0, 128], sizes = [16, 128], strides = [1, 1]} : vector<16x384xf32> to vector<16x128xf32>
    %260 = arith.addf %258, %259 : vector<16x128xf32>
    %261 = arith.negf %260 : vector<16x128xf32>
    %262 = math.exp %261 : vector<16x128xf32>
    %cst_85 = arith.constant 1.000000e+00 : f32
    %263 = vector.broadcast %cst_85 : f32 to vector<16x128xf32>
    %264 = arith.addf %263, %262 : vector<16x128xf32>
    %265 = arith.divf %263, %264 : vector<16x128xf32>
    %266 = vector.extract_strided_slice %249 {offsets = [0, 256], sizes = [16, 128], strides = [1, 1]} : vector<16x384xf32> to vector<16x128xf32>
    %267 = vector.extract_strided_slice %246 {offsets = [0, 256], sizes = [16, 128], strides = [1, 1]} : vector<16x384xf32> to vector<16x128xf32>
    %268 = arith.addf %267, %171 : vector<16x128xf32>
    %269 = arith.mulf %257, %268 : vector<16x128xf32>
    %270 = arith.addf %266, %269 : vector<16x128xf32>
    %271 = math.tanh %270 : vector<16x128xf32>
    %cst_86 = arith.constant 1.000000e+00 : f32
    %272 = vector.broadcast %cst_86 : f32 to vector<16x128xf32>
    %273 = arith.subf %272, %265 : vector<16x128xf32>
    %274 = arith.mulf %273, %271 : vector<16x128xf32>
    %275 = arith.mulf %265, %240 : vector<16x128xf32>
    %276 = arith.addf %274, %275 : vector<16x128xf32>
    %277 = arith.index_cast %c2_i32_80 : i32 to index
    %c0_87 = arith.constant 0 : index
    %c0_88 = arith.constant 0 : index
    %278 = vector.load %arg10[%277, %c0_87, %c0_88] : memref<4x16x128xf32, #tpu.memory_space<vmem>>, vector<1x16x128xf32>
    %279 = vector.shape_cast %278 : vector<1x16x128xf32> to vector<16x128xf32>
    %280 = vector.shape_cast %276 : vector<16x128xf32> to vector<1x16x128xf32>
    tpu.vector_store %arg10[%277, %c0_87, %c0_88], %280 {strides = array<i32>} : memref<4x16x128xf32, #tpu.memory_space<vmem>>, vector<1x16x128xf32>,
    %c3_i32_89 = arith.constant 3 : i32
    %281 = arith.truncf %276 : vector<16x128xf32> to vector<16x128xbf16>
    %cst_90 = arith.constant dense<0.000000e+00> : vector<16x384xf32>
    %282 = tpu.matmul %281, %168, %cst_90 {dimension_numbers = #tpu.dot_dimension_numbers<[1], [0], [0], [1], [0, 0, 1, 1], [], []>} : vector<16x128xbf16>, vector<128x384xbf16>, vector<16x384xf32> -> vector<16x384xf32>
    %283 = arith.index_cast %c3_i32_89 : i32 to index
    %c0_91 = arith.constant 0 : index
    %c0_92 = arith.constant 0 : index
    %284 = vector.load %arg11[%283, %c0_91, %c0_92] : memref<4x16x384xf32, #tpu.memory_space<vmem>>, vector<1x16x384xf32>
    %285 = vector.shape_cast %284 : vector<1x16x384xf32> to vector<16x384xf32>
    %286 = vector.extract_strided_slice %285 {offsets = [0, 0], sizes = [16, 128], strides = [1, 1]} : vector<16x384xf32> to vector<16x128xf32>
    %287 = vector.extract_strided_slice %282 {offsets = [0, 0], sizes = [16, 128], strides = [1, 1]} : vector<16x384xf32> to vector<16x128xf32>
    %288 = arith.addf %286, %287 : vector<16x128xf32>
    %289 = arith.negf %288 : vector<16x128xf32>
    %290 = math.exp %289 : vector<16x128xf32>
    %cst_93 = arith.constant 1.000000e+00 : f32
    %291 = vector.broadcast %cst_93 : f32 to vector<16x128xf32>
    %292 = arith.addf %291, %290 : vector<16x128xf32>
    %293 = arith.divf %291, %292 : vector<16x128xf32>
    %294 = vector.extract_strided_slice %285 {offsets = [0, 128], sizes = [16, 128], strides = [1, 1]} : vector<16x384xf32> to vector<16x128xf32>
    %295 = vector.extract_strided_slice %282 {offsets = [0, 128], sizes = [16, 128], strides = [1, 1]} : vector<16x384xf32> to vector<16x128xf32>
    %296 = arith.addf %294, %295 : vector<16x128xf32>
    %297 = arith.negf %296 : vector<16x128xf32>
    %298 = math.exp %297 : vector<16x128xf32>
    %cst_94 = arith.constant 1.000000e+00 : f32
    %299 = vector.broadcast %cst_94 : f32 to vector<16x128xf32>
    %300 = arith.addf %299, %298 : vector<16x128xf32>
    %301 = arith.divf %299, %300 : vector<16x128xf32>
    %302 = vector.extract_strided_slice %285 {offsets = [0, 256], sizes = [16, 128], strides = [1, 1]} : vector<16x384xf32> to vector<16x128xf32>
    %303 = vector.extract_strided_slice %282 {offsets = [0, 256], sizes = [16, 128], strides = [1, 1]} : vector<16x384xf32> to vector<16x128xf32>
    %304 = arith.addf %303, %171 : vector<16x128xf32>
    %305 = arith.mulf %293, %304 : vector<16x128xf32>
    %306 = arith.addf %302, %305 : vector<16x128xf32>
    %307 = math.tanh %306 : vector<16x128xf32>
    %cst_95 = arith.constant 1.000000e+00 : f32
    %308 = vector.broadcast %cst_95 : f32 to vector<16x128xf32>
    %309 = arith.subf %308, %301 : vector<16x128xf32>
    %310 = arith.mulf %309, %307 : vector<16x128xf32>
    %311 = arith.mulf %301, %276 : vector<16x128xf32>
    %312 = arith.addf %310, %311 : vector<16x128xf32>
    %313 = arith.index_cast %c3_i32_89 : i32 to index
    %c0_96 = arith.constant 0 : index
    %c0_97 = arith.constant 0 : index
    %314 = vector.load %arg10[%313, %c0_96, %c0_97] : memref<4x16x128xf32, #tpu.memory_space<vmem>>, vector<1x16x128xf32>
    %315 = vector.shape_cast %314 : vector<1x16x128xf32> to vector<16x128xf32>
    %316 = vector.shape_cast %312 : vector<16x128xf32> to vector<1x16x128xf32>
    tpu.vector_store %arg10[%313, %c0_96, %c0_97], %316 {strides = array<i32>} : memref<4x16x128xf32, #tpu.memory_space<vmem>>, vector<1x16x128xf32>,
    %c4_i32_98 = arith.constant 4 : i32
    return
  }
  func.func @transform_0(%arg0: i32) -> (i32, i32, i32) {
    %c0_i32 = arith.constant 0 : i32
    %c0_i32_0 = arith.constant 0 : i32
    %c0_i32_1 = arith.constant 0 : i32
    return %c0_i32, %arg0, %c0_i32_0 : i32, i32, i32
  }
  func.func @transform_1(%arg0: i32) -> (i32, i32) {
    %c0_i32 = arith.constant 0 : i32
    %c0_i32_0 = arith.constant 0 : i32
    %c0_i32_1 = arith.constant 0 : i32
    return %c0_i32, %c0_i32_0 : i32, i32
  }
  func.func @transform_2(%arg0: i32) -> (i32, i32) {
    %c0_i32 = arith.constant 0 : i32
    %c0_i32_0 = arith.constant 0 : i32
    %c0_i32_1 = arith.constant 0 : i32
    return %c0_i32, %c0_i32_0 : i32, i32
  }
  func.func @transform_3(%arg0: i32) -> (i32, i32) {
    %c0_i32 = arith.constant 0 : i32
    %c0_i32_0 = arith.constant 0 : i32
    %c0_i32_1 = arith.constant 0 : i32
    return %c0_i32, %c0_i32_0 : i32, i32
  }
  func.func @transform_4(%arg0: i32) -> (i32, i32) {
    %c0_i32 = arith.constant 0 : i32
    %c0_i32_0 = arith.constant 0 : i32
    %c0_i32_1 = arith.constant 0 : i32
    return %c0_i32, %c0_i32_0 : i32, i32
  }
  func.func @transform_5(%arg0: i32) -> (i32, i32) {
    %c0_i32 = arith.constant 0 : i32
    %c0_i32_0 = arith.constant 0 : i32
    %c0_i32_1 = arith.constant 0 : i32
    return %c0_i32, %c0_i32_0 : i32, i32
  }
  func.func @transform_6(%arg0: i32) -> (i32, i32) {
    %c0_i32 = arith.constant 0 : i32
    %c0_i32_0 = arith.constant 0 : i32
    %c0_i32_1 = arith.constant 0 : i32
    return %c0_i32, %c0_i32_0 : i32, i32
  }
  func.func @transform_7(%arg0: i32) -> (i32, i32) {
    %c0_i32 = arith.constant 0 : i32
    %c0_i32_0 = arith.constant 0 : i32
    %c0_i32_1 = arith.constant 0 : i32
    return %c0_i32, %c0_i32_0 : i32, i32
  }
  func.func @transform_8(%arg0: i32) -> (i32, i32) {
    %c0_i32 = arith.constant 0 : i32
    %c0_i32_0 = arith.constant 0 : i32
    %c0_i32_1 = arith.constant 0 : i32
    return %c0_i32, %c0_i32_0 : i32, i32
  }
  func.func @transform_9(%arg0: i32) -> (i32, i32, i32) {
    %c0_i32 = arith.constant 0 : i32
    %c0_i32_0 = arith.constant 0 : i32
    %c0_i32_1 = arith.constant 0 : i32
    return %c0_i32, %arg0, %c0_i32_0 : i32, i32, i32
  }
}

</mosaic_0001>

<llo_original>
// kernel: model_forward.1
$region0: #{model_forward.1}
  #allocation0 [shape = 'u32[]', space=smem, size = 0x4, offset = 0x4, fixed_abs, tag = 'smem constant byte address 0x4 - core index']
  #allocation1 [shape = 'u32[144,128]{1,0:T(1,128)}', space=vmem, size = 0x12000, scoped, tag = 'internal scratch']
  #allocation2 [shape = 'f32[4,16,384]{2,1,0:T(8,128)}', space=vmem, size = 0x18000, scoped, tag = 'scratch operand']
  #allocation3 [shape = 'f32[4,16,128]{2,1,0:T(8,128)}', space=vmem, size = 0x8000, scoped, tag = 'scratch operand']
  %s0 = inlined_call_operand.vmem [shape: bf16[4,16,16], index: 0, kind: input, shape index: {}]
  %s1 = inlined_call_operand.vmem [shape: bf16[16,384], index: 1, kind: input, shape index: {}]
  %s2 = inlined_call_operand.hbm [shape: bf16[128,384], index: 2, kind: input, shape index: {}]
  %s3 = inlined_call_operand.vmem [shape: f32[1,384], index: 3, kind: input, shape index: {}]
  %s4 = inlined_call_operand.vmem [shape: f32[1,128], index: 4, kind: input, shape index: {}]
  %s5 = inlined_call_operand.hbm [shape: bf16[128,384], index: 5, kind: input, shape index: {}]
  %s6 = inlined_call_operand.hbm [shape: bf16[128,384], index: 6, kind: input, shape index: {}]
  %s7 = inlined_call_operand.vmem [shape: f32[1,384], index: 7, kind: input, shape index: {}]
  %s8 = inlined_call_operand.vmem [shape: f32[1,128], index: 8, kind: input, shape index: {}]
  %s9 = inlined_call_operand.vmem [shape: f32[4,16,128], index: 9, kind: output, shape index: {}]
  %s10 = sld [smem:[#allocation0]]
  $region58: #{model_forward.1} parent=0
    _
  %s12 = ssub.s32 1, %s10
  %s13 = scalar_select 0, %s12, %s10
  $region1: #{model_forward.1} parent=0
    #allocation4 [shape = 'u8[98304]{0}', space=vmem, size = 0x18000, scoped, tag = 'input window, operand 2, single buffered']
    #allocation5 [shape = 's32[1]{0}', space=sflag, size = 0x4, scoped, tag = 'scoped memory for model_forward.1']
    #allocation6 [shape = 'u8[98304]{0}', space=vmem, size = 0x18000, scoped, tag = 'input window, operand 5, single buffered']
    #allocation7 [shape = 's32[1]{0}', space=sflag, size = 0x4, scoped, tag = 'scoped memory for model_forward.1']
    #allocation8 [shape = 'u8[98304]{0}', space=vmem, size = 0x18000, scoped, tag = 'input window, operand 6, single buffered']
    %14 = vsyncpa [#allocation5], 0
    %15 = vsyncpa [#allocation7], 0
    // Predicated region
    $region2: #{model_forward.1} parent=1 // pred_check
      _
    $region3: #{model_forward.1} parent=1 // pred_check_branch
      %17 = sbr.rel (0) target = $region5
    $region4: #{model_forward.1} parent=1 // pred_region
      _
    $region5: #{model_forward.1} parent=1 // pred_fallthru
      _
    // Predicated region
    $region6: #{model_forward.1} parent=1 // pred_check
      _
    $region7: #{model_forward.1} parent=1 // pred_check_branch
      %19 = sbr.rel (0) target = $region9
    $region8: #{model_forward.1} parent=1 // pred_region
      _
    $region9: #{model_forward.1} parent=1 // pred_fallthru
      _
    // Predicated region
    $region10: #{model_forward.1} parent=1 // pred_check
      _
    $region11: #{model_forward.1} parent=1 // pred_check_branch
      %21 = sbr.rel (0) target = $region13
    $region12: #{model_forward.1} parent=1 // pred_region
      %s23 = ssub.s32 3072, 3072
      %24 = vsyncadd [#allocation5], %s23
      %s25 = sshll.u32 [#allocation4], 4
      %s26 = int_to_ptr.vmem [resolvable:$true] %s25
      %31 = dma.hbm_to_vmem [thread:$0]  %s2, 3072, %s26, [#allocation5], 192, 192, 12
    $region13: #{model_forward.1} parent=1 // pred_fallthru
      _
    // Predicated region
    $region14: #{model_forward.1} parent=1 // pred_check
      _
    $region15: #{model_forward.1} parent=1 // pred_check_branch
      %33 = sbr.rel (0) target = $region17
    $region16: #{model_forward.1} parent=1 // pred_region
      _
    $region17: #{model_forward.1} parent=1 // pred_fallthru
      _
    // Predicated region
    $region18: #{model_forward.1} parent=1 // pred_check
      _
    $region19: #{model_forward.1} parent=1 // pred_check_branch
      %35 = sbr.rel (0) target = $region21
    $region20: #{model_forward.1} parent=1 // pred_region
      _
    $region21: #{model_forward.1} parent=1 // pred_fallthru
      _
    // Predicated region
    $region22: #{model_forward.1} parent=1 // pred_check
      _
    $region23: #{model_forward.1} parent=1 // pred_check_branch
      %37 = sbr.rel (0) target = $region25
    $region24: #{model_forward.1} parent=1 // pred_region
      %s39 = ssub.s32 3072, 3072
      %40 = vsyncadd [#allocation7], %s39
      %s41 = sshll.u32 [#allocation6], 4
      %s42 = int_to_ptr.vmem [resolvable:$true] %s41
      %47 = dma.hbm_to_vmem [thread:$0]  %s5, 3072, %s42, [#allocation7], 192, 192, 12
    $region25: #{model_forward.1} parent=1 // pred_fallthru
      _
    // Predicated region
    $region26: #{model_forward.1} parent=1 // pred_check
      _
    $region27: #{model_forward.1} parent=1 // pred_check_branch
      %49 = sbr.rel (0) target = $region29
    $region28: #{model_forward.1} parent=1 // pred_region
      %s51 = ssub.s32 3072, 3072
      %52 = vsyncadd [#allocation7], %s51
      %s53 = sshll.u32 [#allocation8], 4
      %s54 = int_to_ptr.vmem [resolvable:$true] %s53
      %59 = dma.hbm_to_vmem [thread:$0]  %s6, 3072, %s54, [#allocation7], 192, 192, 12
    $region29: #{model_forward.1} parent=1 // pred_fallthru
      _
    // Predicated region
    $region30: #{model_forward.1} parent=1 // pred_check
      _
    $region31: #{model_forward.1} parent=1 // pred_check_branch
      %61 = sbr.rel (0) target = $region33
    $region32: #{model_forward.1} parent=1 // pred_region
      _
    $region33: #{model_forward.1} parent=1 // pred_fallthru
      _
    // Predicated region
    $region34: #{model_forward.1} parent=1 // pred_check
      _
    $region35: #{model_forward.1} parent=1 // pred_check_branch
      %63 = sbr.rel (0) target = $region37
    $region36: #{model_forward.1} parent=1 // pred_region
      _
    $region37: #{model_forward.1} parent=1 // pred_fallthru
      _
    // Predicated region
    $region38: #{model_forward.1} parent=1 // pred_check
      _
    $region39: #{model_forward.1} parent=1 // pred_check_branch
      %65 = sbr.rel (0) target = $region41
    $region40: #{model_forward.1} parent=1 // pred_region
      %66 = dma.done [#allocation5], 3072
    $region41: #{model_forward.1} parent=1 // pred_fallthru
      _
    // Predicated region
    $region42: #{model_forward.1} parent=1 // pred_check
      _
    $region43: #{model_forward.1} parent=1 // pred_check_branch
      %68 = sbr.rel (0) target = $region45
    $region44: #{model_forward.1} parent=1 // pred_region
      %69 = dma.done [#allocation7], 3072
    $region45: #{model_forward.1} parent=1 // pred_fallthru
      _
    // Predicated region
    $region46: #{model_forward.1} parent=1 // pred_check
      _
    $region47: #{model_forward.1} parent=1 // pred_check_branch
      %71 = sbr.rel (0) target = $region49
    $region48: #{model_forward.1} parent=1 // pred_region
      %72 = dma.done [#allocation7], 3072
    $region49: #{model_forward.1} parent=1 // pred_fallthru
      _
    %v74 = vld [vmem:[%s0] sm:$0xf]
    %v75 = vld [vmem:[%s0 + $0x4] sm:$0xf]
    %v76 = vld [vmem:[%s0 + $0x8] sm:$0xf]
    %v77 = vld [vmem:[%s0 + $0xc] sm:$0xf]
    %v78 = vld [vmem:[%s0 + $0x10] sm:$0xf]
    %v79 = vld [vmem:[%s0 + $0x14] sm:$0xf]
    %v80 = vld [vmem:[%s0 + $0x18] sm:$0xf]
    %v81 = vld [vmem:[%s0 + $0x1c] sm:$0xf]
    %v82 = vld [vmem:[%s1] sm:$0xff]
    %v83 = vld [vmem:[%s1 + $0x8] sm:$0xf]
    %v84 = vld [vmem:[%s1 + $0xc] sm:$0xff]
    %v85 = vld [vmem:[%s1 + $0x14] sm:$0xf]
    %v86 = vld [vmem:[%s3] sm:$0x7]
    %v88 = vlaneseq
    %v89 = vshrl.u32 %v88, 7
    %v90 = vsub.s32 0, %v89
    %v91 = vrot.slane %v86, %v90
    %v92 = vlaneseq
    %v93 = vshrl.u32 %v92, 7
    %v94 = vsub.s32 1, %v93
    %v95 = vrot.slane %v86, %v94
    %v96 = vlaneseq
    %v97 = vshrl.u32 %v96, 7
    %v98 = vsub.s32 2, %v97
    %v99 = vrot.slane %v86, %v98
    %v111 = vunpack.c.l.b16 %v74
    %v112 = vunpack.c.l.b16 %v75
    %v113 = vunpack.c.l.b16 %v76
    %v114 = vunpack.c.l.b16 %v77
    %v115 = vunpack.c.l.b16 %v78
    %v116 = vunpack.c.l.b16 %v79
    %v117 = vunpack.c.l.b16 %v80
    %v118 = vunpack.c.l.b16 %v81
    %v119 = vpack.c.b16 %v112, %v111
    %v120 = vpack.c.b16 %v114, %v113
    %v121 = vpack.c.b16 %v116, %v115
    %v122 = vpack.c.b16 %v118, %v117
    %v127 = vunpack.c.l.b16 %v82
    %v128 = vunpack.c.h.b16 %v82
    %v129 = vunpack.c.l.b16 %v83
    %v130 = vunpack.c.l.b16 %v84
    %v131 = vunpack.c.h.b16 %v84
    %v132 = vunpack.c.l.b16 %v85
    %v133 = vpack.c.b16 %v130, %v127
    %v134 = vpack.c.b16 %v131, %v128
    %v135 = vpack.c.b16 %v132, %v129
    %vm139 = vcmask 130048
    %v141 = vsel %vm139, %v119, 0
    %v144 = vsel %vm139, %v120, 0
    %v147 = vsel %vm139, %v121, 0
    %v150 = vsel %vm139, %v122, 0
    %152 = vmatprep.subr.bf16.mxu0 %v134
    %153 = vmatpush1.bf16.msra.mxu0 %v133
    %154 = vmatprep.subr.bf16.mxu0 0
    %155 = vmatpush1.bf16.msra.mxu0 0
    %156 = vmatprep.subr.bf16.mxu0 0
    %157 = vmatpush1.bf16.msra.mxu0 0
    %158 = vmatprep.subr.bf16.mxu0 0
    %159 = vmatpush1.bf16.msra.mxu0 0
    %160 = vmatprep.subr.bf16.mxu0 0
    %161 = vmatpush1.bf16.msra.mxu0 0
    %162 = vmatprep.subr.bf16.mxu0 0
    %163 = vmatpush1.bf16.msra.mxu0 0
    %164 = vmatprep.subr.bf16.mxu0 0
    %165 = vmatpush1.bf16.msra.mxu0 0
    %166 = vmatprep.subr.bf16.mxu0 0
    %167 = vmatpush1.bf16.msra.mxu0 0
    %168 = vmatprep.subr.bf16.mxu0 0
    %169 = vmatpush1.bf16.msra.mxu0 0
    %170 = vmatprep.subr.bf16.mxu0 0
    %171 = vmatpush1.bf16.msra.mxu0 0
    %172 = vmatprep.subr.bf16.mxu0 0
    %173 = vmatpush1.bf16.msra.mxu0 0
    %174 = vmatprep.subr.bf16.mxu0 0
    %175 = vmatpush1.bf16.msra.mxu0 0
    %176 = vmatprep.subr.bf16.mxu0 0
    %177 = vmatpush1.bf16.msra.mxu0 0
    %178 = vmatprep.subr.bf16.mxu0 0
    %179 = vmatpush1.bf16.msra.mxu0 0
    %180 = vmatprep.subr.bf16.mxu0 0
    %181 = vmatpush1.bf16.msra.mxu0 0
    %182 = vmatprep.subr.bf16.mxu0 0
    %183 = vmatpush1.bf16.msra.mxu0 0
    %184 = vmatprep.mubr.bf16.mxu0 0
    %185 = vmatmul.mubr.bf16.gmra.mrb[0].mxu0 %v141
    %v186 = vpop.f32.mrb[0].mxu0
    %v187 = vadd.f32 %v91, %v186
    %v188 = vpop.f32.mrb[0].mxu0
    %v189 = vadd.f32 %v95, %v188
    %v190 = vpop.f32.mrb[0].mxu0
    %v191 = vadd.f32 %v91, %v190
    %v192 = vpop.f32.mrb[0].mxu0
    %v193 = vadd.f32 %v95, %v192
    %194 = vmatprep.mubr.bf16.mxu0 0
    %195 = vmatmul.mubr.bf16.gmra.mrb[0].mxu0 %v144
    %v196 = vpop.f32.mrb[0].mxu0
    %v197 = vadd.f32 %v91, %v196
    %v198 = vpop.f32.mrb[0].mxu0
    %v199 = vadd.f32 %v95, %v198
    %v200 = vpop.f32.mrb[0].mxu0
    %v201 = vadd.f32 %v91, %v200
    %v202 = vpop.f32.mrb[0].mxu0
    %v203 = vadd.f32 %v95, %v202
    %204 = vmatprep.mubr.bf16.mxu0 0
    %205 = vmatmul.mubr.bf16.gmra.mrb[0].mxu0 %v147
    %v206 = vpop.f32.mrb[0].mxu0
    %v207 = vadd.f32 %v91, %v206
    %v208 = vpop.f32.mrb[0].mxu0
    %v209 = vadd.f32 %v95, %v208
    %v210 = vpop.f32.mrb[0].mxu0
    %v211 = vadd.f32 %v91, %v210
    %v212 = vpop.f32.mrb[0].mxu0
    %v213 = vadd.f32 %v95, %v212
    %214 = vmatprep.mubr.bf16.mxu0 0
    %215 = vmatmul.mubr.bf16.gmra.mrb[0].mxu0 %v150
    %v216 = vpop.f32.mrb[0].mxu0
    %v217 = vadd.f32 %v91, %v216
    %v218 = vpop.f32.mrb[0].mxu0
    %v219 = vadd.f32 %v95, %v218
    %v220 = vpop.f32.mrb[0].mxu0
    %v221 = vadd.f32 %v91, %v220
    %v222 = vpop.f32.mrb[0].mxu0
    %v223 = vadd.f32 %v95, %v222
    %224 = vdwg.mxu0
    %225 = vmatprep.subr.bf16.mxu0 0
    %226 = vmatpush1.bf16.msra.mxu0 %v135
    %227 = vmatprep.subr.bf16.mxu0 0
    %228 = vmatpush1.bf16.msra.mxu0 0
    %229 = vmatprep.subr.bf16.mxu0 0
    %230 = vmatpush1.bf16.msra.mxu0 0
    %231 = vmatprep.subr.bf16.mxu0 0
    %232 = vmatpush1.bf16.msra.mxu0 0
    %233 = vmatprep.subr.bf16.mxu0 0
    %234 = vmatpush1.bf16.msra.mxu0 0
    %235 = vmatprep.subr.bf16.mxu0 0
    %236 = vmatpush1.bf16.msra.mxu0 0
    %237 = vmatprep.subr.bf16.mxu0 0
    %238 = vmatpush1.bf16.msra.mxu0 0
    %239 = vmatprep.subr.bf16.mxu0 0
    %240 = vmatpush1.bf16.msra.mxu0 0
    %241 = vmatprep.subr.bf16.mxu0 0
    %242 = vmatpush1.bf16.msra.mxu0 0
    %243 = vmatprep.subr.bf16.mxu0 0
    %244 = vmatpush1.bf16.msra.mxu0 0
    %245 = vmatprep.subr.bf16.mxu0 0
    %246 = vmatpush1.bf16.msra.mxu0 0
    %247 = vmatprep.subr.bf16.mxu0 0
    %248 = vmatpush1.bf16.msra.mxu0 0
    %249 = vmatprep.subr.bf16.mxu0 0
    %250 = vmatpush1.bf16.msra.mxu0 0
    %251 = vmatprep.subr.bf16.mxu0 0
    %252 = vmatpush1.bf16.msra.mxu0 0
    %253 = vmatprep.subr.bf16.mxu0 0
    %254 = vmatpush1.bf16.msra.mxu0 0
    %255 = vmatprep.subr.bf16.mxu0 0
    %256 = vmatpush1.bf16.msra.mxu0 0
    %257 = vmatprep.mubr.bf16.mxu0 0
    %258 = vmatmul.mubr.bf16.gmra.mrb[0].mxu0 %v141
    %v259 = vpop.f32.mrb[0].mxu0
    %v260 = vadd.f32 %v99, %v259
    %v261 = vpop.f32.mrb[0].mxu0
    %v262 = vpop.f32.mrb[0].mxu0
    %v263 = vadd.f32 %v99, %v262
    %v264 = vpop.f32.mrb[0].mxu0
    %265 = vmatprep.mubr.bf16.mxu0 0
    %266 = vmatmul.mubr.bf16.gmra.mrb[0].mxu0 %v144
    %v267 = vpop.f32.mrb[0].mxu0
    %v268 = vadd.f32 %v99, %v267
    %v269 = vpop.f32.mrb[0].mxu0
    %v270 = vpop.f32.mrb[0].mxu0
    %v271 = vadd.f32 %v99, %v270
    %v272 = vpop.f32.mrb[0].mxu0
    %273 = vmatprep.mubr.bf16.mxu0 0
    %274 = vmatmul.mubr.bf16.gmra.mrb[0].mxu0 %v147
    %v275 = vpop.f32.mrb[0].mxu0
    %v276 = vadd.f32 %v99, %v275
    %v277 = vpop.f32.mrb[0].mxu0
    %v278 = vpop.f32.mrb[0].mxu0
    %v279 = vadd.f32 %v99, %v278
    %v280 = vpop.f32.mrb[0].mxu0
    %281 = vmatprep.mubr.bf16.mxu0 0
    %282 = vmatmul.mubr.bf16.gmra.mrb[0].mxu0 %v150
    %v283 = vpop.f32.mrb[0].mxu0
    %v284 = vadd.f32 %v99, %v283
    %v285 = vpop.f32.mrb[0].mxu0
    %v286 = vpop.f32.mrb[0].mxu0
    %v287 = vadd.f32 %v99, %v286
    %v288 = vpop.f32.mrb[0].mxu0
    %289 = vdwg.mxu0
    %290 = vst [vmem:[#allocation2] sm:$0xff] %v187
    %291 = vst [vmem:[#allocation2 + $0x8] sm:$0xff] %v189
    %292 = vst [vmem:[#allocation2 + $0x10] sm:$0xff] %v260
    %293 = vst [vmem:[#allocation2 + $0x18] sm:$0xff] %v191
    %294 = vst [vmem:[#allocation2 + $0x20] sm:$0xff] %v193
    %295 = vst [vmem:[#allocation2 + $0x28] sm:$0xff] %v263
    %296 = vst [vmem:[#allocation2 + $0x30] sm:$0xff] %v197
    %297 = vst [vmem:[#allocation2 + $0x38] sm:$0xff] %v199
    %298 = vst [vmem:[#allocation2 + $0x40] sm:$0xff] %v268
    %299 = vst [vmem:[#allocation2 + $0x48] sm:$0xff] %v201
    %300 = vst [vmem:[#allocation2 + $0x50] sm:$0xff] %v203
    %301 = vst [vmem:[#allocation2 + $0x58] sm:$0xff] %v271
    %302 = vst [vmem:[#allocation2 + $0x60] sm:$0xff] %v207
    %303 = vst [vmem:[#allocation2 + $0x68] sm:$0xff] %v209
    %304 = vst [vmem:[#allocation2 + $0x70] sm:$0xff] %v276
    %305 = vst [vmem:[#allocation2 + $0x78] sm:$0xff] %v211
    %306 = vst [vmem:[#allocation2 + $0x80] sm:$0xff] %v213
    %307 = vst [vmem:[#allocation2 + $0x88] sm:$0xff] %v279
    %308 = vst [vmem:[#allocation2 + $0x90] sm:$0xff] %v217
    %309 = vst [vmem:[#allocation2 + $0x98] sm:$0xff] %v219
    %310 = vst [vmem:[#allocation2 + $0xa0] sm:$0xff] %v284
    %311 = vst [vmem:[#allocation2 + $0xa8] sm:$0xff] %v221
    %312 = vst [vmem:[#allocation2 + $0xb0] sm:$0xff] %v223
    %313 = vst [vmem:[#allocation2 + $0xb8] sm:$0xff] %v287
    %v314 = vld [vmem:[#allocation4] sm:$0xff]
    %v315 = vld [vmem:[#allocation4 + $0x8] sm:$0xf]
    %v316 = vld [vmem:[#allocation4 + $0xc] sm:$0xff]
    %v317 = vld [vmem:[#allocation4 + $0x14] sm:$0xf]
    %v318 = vld [vmem:[#allocation4 + $0x18] sm:$0xff]
    %v319 = vld [vmem:[#allocation4 + $0x20] sm:$0xf]
    %v320 = vld [vmem:[#allocation4 + $0x24] sm:$0xff]
    %v321 = vld [vmem:[#allocation4 + $0x2c] sm:$0xf]
    %v322 = vld [vmem:[#allocation4 + $0x30] sm:$0xff]
    %v323 = vld [vmem:[#allocation4 + $0x38] sm:$0xf]
    %v324 = vld [vmem:[#allocation4 + $0x3c] sm:$0xff]
    %v325 = vld [vmem:[#allocation4 + $0x44] sm:$0xf]
    %v326 = vld [vmem:[#allocation4 + $0x48] sm:$0xff]
    %v327 = vld [vmem:[#allocation4 + $0x50] sm:$0xf]
    %v328 = vld [vmem:[#allocation4 + $0x54] sm:$0xff]
    %v329 = vld [vmem:[#allocation4 + $0x5c] sm:$0xf]
    %v330 = vld [vmem:[#allocation4 + $0x60] sm:$0xff]
    %v331 = vld [vmem:[#allocation4 + $0x68] sm:$0xf]
    %v332 = vld [vmem:[#allocation4 + $0x6c] sm:$0xff]
    %v333 = vld [vmem:[#allocation4 + $0x74] sm:$0xf]
    %v334 = vld [vmem:[#allocation4 + $0x78] sm:$0xff]
    %v335 = vld [vmem:[#allocation4 + $0x80] sm:$0xf]
    %v336 = vld [vmem:[#allocation4 + $0x84] sm:$0xff]
    %v337 = vld [vmem:[#allocation4 + $0x8c] sm:$0xf]
    %v338 = vld [vmem:[#allocation4 + $0x90] sm:$0xff]
    %v339 = vld [vmem:[#allocation4 + $0x98] sm:$0xf]
    %v340 = vld [vmem:[#allocation4 + $0x9c] sm:$0xff]
    %v341 = vld [vmem:[#allocation4 + $0xa4] sm:$0xf]
    %v342 = vld [vmem:[#allocation4 + $0xa8] sm:$0xff]
    %v343 = vld [vmem:[#allocation4 + $0xb0] sm:$0xf]
    %v344 = vld [vmem:[#allocation4 + $0xb4] sm:$0xff]
    %v345 = vld [vmem:[#allocation4 + $0xbc] sm:$0xf]
    %v346 = vld [vmem:[%s4] sm:$0x1]
    %v348 = vlaneseq
    %v349 = vshrl.u32 %v348, 7
    %v350 = vsub.s32 0, %v349
    %v351 = vrot.slane %v346, %v350
    %v385 = vunpack.c.l.b16 %v314
    %v386 = vunpack.c.h.b16 %v314
    %v387 = vunpack.c.l.b16 %v315
    %v388 = vunpack.c.l.b16 %v316
    %v389 = vunpack.c.h.b16 %v316
    %v390 = vunpack.c.l.b16 %v317
    %v391 = vunpack.c.l.b16 %v318
    %v392 = vunpack.c.h.b16 %v318
    %v393 = vunpack.c.l.b16 %v319
    %v394 = vunpack.c.l.b16 %v320
    %v395 = vunpack.c.h.b16 %v320
    %v396 = vunpack.c.l.b16 %v321
    %v397 = vunpack.c.l.b16 %v322
    %v398 = vunpack.c.h.b16 %v322
    %v399 = vunpack.c.l.b16 %v323
    %v400 = vunpack.c.l.b16 %v324
    %v401 = vunpack.c.h.b16 %v324
    %v402 = vunpack.c.l.b16 %v325
    %v403 = vunpack.c.l.b16 %v326
    %v404 = vunpack.c.h.b16 %v326
    %v405 = vunpack.c.l.b16 %v327
    %v406 = vunpack.c.l.b16 %v328
    %v407 = vunpack.c.h.b16 %v328
    %v408 = vunpack.c.l.b16 %v329
    %v409 = vunpack.c.l.b16 %v330
    %v410 = vunpack.c.h.b16 %v330
    %v411 = vunpack.c.l.b16 %v331
    %v412 = vunpack.c.l.b16 %v332
    %v413 = vunpack.c.h.b16 %v332
    %v414 = vunpack.c.l.b16 %v333
    %v415 = vunpack.c.l.b16 %v334
    %v416 = vunpack.c.h.b16 %v334
    %v417 = vunpack.c.l.b16 %v335
    %v418 = vunpack.c.l.b16 %v336
    %v419 = vunpack.c.h.b16 %v336
    %v420 = vunpack.c.l.b16 %v337
    %v421 = vunpack.c.l.b16 %v338
    %v422 = vunpack.c.h.b16 %v338
    %v423 = vunpack.c.l.b16 %v339
    %v424 = vunpack.c.l.b16 %v340
    %v425 = vunpack.c.h.b16 %v340
    %v426 = vunpack.c.l.b16 %v341
    %v427 = vunpack.c.l.b16 %v342
    %v428 = vunpack.c.h.b16 %v342
    %v429 = vunpack.c.l.b16 %v343
    %v430 = vunpack.c.l.b16 %v344
    %v431 = vunpack.c.h.b16 %v344
    %v432 = vunpack.c.l.b16 %v345
    %v433 = vpack.c.b16 %v388, %v385
    %v434 = vpack.c.b16 %v389, %v386
    %v435 = vpack.c.b16 %v390, %v387
    %v436 = vpack.c.b16 %v394, %v391
    %v437 = vpack.c.b16 %v395, %v392
    %v438 = vpack.c.b16 %v396, %v393
    %v439 = vpack.c.b16 %v400, %v397
    %v440 = vpack.c.b16 %v401, %v398
    %v441 = vpack.c.b16 %v402, %v399
    %v442 = vpack.c.b16 %v406, %v403
    %v443 = vpack.c.b16 %v407, %v404
    %v444 = vpack.c.b16 %v408, %v405
    %v445 = vpack.c.b16 %v412, %v409
    %v446 = vpack.c.b16 %v413, %v410
    %v447 = vpack.c.b16 %v414, %v411
    %v448 = vpack.c.b16 %v418, %v415
    %v449 = vpack.c.b16 %v419, %v416
    %v450 = vpack.c.b16 %v420, %v417
    %v451 = vpack.c.b16 %v424, %v421
    %v452 = vpack.c.b16 %v425, %v422
    %v453 = vpack.c.b16 %v426, %v423
    %v454 = vpack.c.b16 %v430, %v427
    %v455 = vpack.c.b16 %v431, %v428
    %v456 = vpack.c.b16 %v432, %v429
    %481 = vmatprep.subr.bf16.mxu0 %v434
    %482 = vmatpush1.bf16.msra.mxu0 %v433
    %483 = vmatprep.subr.bf16.mxu0 %v437
    %484 = vmatpush1.bf16.msra.mxu0 %v436
    %485 = vmatprep.subr.bf16.mxu0 %v440
    %486 = vmatpush1.bf16.msra.mxu0 %v439
    %487 = vmatprep.subr.bf16.mxu0 %v443
    %488 = vmatpush1.bf16.msra.mxu0 %v442
    %489 = vmatprep.subr.bf16.mxu0 %v446
    %490 = vmatpush1.bf16.msra.mxu0 %v445
    %491 = vmatprep.subr.bf16.mxu0 %v449
    %492 = vmatpush1.bf16.msra.mxu0 %v448
    %493 = vmatprep.subr.bf16.mxu0 %v452
    %494 = vmatpush1.bf16.msra.mxu0 %v451
    %495 = vmatprep.subr.bf16.mxu0 %v455
    %496 = vmatpush1.bf16.msra.mxu0 %v454
    %497 = vmatprep.subr.bf16.mxu0 0
    %498 = vmatpush1.bf16.msra.mxu0 0
    %499 = vmatprep.subr.bf16.mxu0 0
    %500 = vmatpush1.bf16.msra.mxu0 0
    %501 = vmatprep.subr.bf16.mxu0 0
    %502 = vmatpush1.bf16.msra.mxu0 0
    %503 = vmatprep.subr.bf16.mxu0 0
    %504 = vmatpush1.bf16.msra.mxu0 0
    %505 = vmatprep.subr.bf16.mxu0 0
    %506 = vmatpush1.bf16.msra.mxu0 0
    %507 = vmatprep.subr.bf16.mxu0 0
    %508 = vmatpush1.bf16.msra.mxu0 0
    %509 = vmatprep.subr.bf16.mxu0 0
    %510 = vmatpush1.bf16.msra.mxu0 0
    %511 = vmatprep.subr.bf16.mxu0 0
    %512 = vmatpush1.bf16.msra.mxu0 0
    %513 = vmatprep.mubr.bf16.mxu0 0
    %514 = vmatmul.mubr.bf16.gmra.mrb[0].mxu0 0
    %v515 = vpop.f32.mrb[0].mxu0
    %v516 = vadd.f32 0.0, %v515
    %v517 = vpop.f32.mrb[0].mxu0
    %v518 = vadd.f32 0.0, %v517
    %v519 = vpop.f32.mrb[0].mxu0
    %v520 = vadd.f32 0.0, %v519
    %v521 = vpop.f32.mrb[0].mxu0
    %v522 = vadd.f32 0.0, %v521
    %523 = vdwg.mxu0
    %524 = vmatprep.subr.bf16.mxu0 0
    %525 = vmatpush1.bf16.msra.mxu0 %v435
    %526 = vmatprep.subr.bf16.mxu0 0
    %527 = vmatpush1.bf16.msra.mxu0 %v438
    %528 = vmatprep.subr.bf16.mxu0 0
    %529 = vmatpush1.bf16.msra.mxu0 %v441
    %530 = vmatprep.subr.bf16.mxu0 0
    %531 = vmatpush1.bf16.msra.mxu0 %v444
    %532 = vmatprep.subr.bf16.mxu0 0
    %533 = vmatpush1.bf16.msra.mxu0 %v447
    %534 = vmatprep.subr.bf16.mxu0 0
    %535 = vmatpush1.bf16.msra.mxu0 %v450
    %536 = vmatprep.subr.bf16.mxu0 0
    %537 = vmatpush1.bf16.msra.mxu0 %v453
    %538 = vmatprep.subr.bf16.mxu0 0
    %539 = vmatpush1.bf16.msra.mxu0 %v456
    %540 = vmatprep.subr.bf16.mxu0 0
    %541 = vmatpush1.bf16.msra.mxu0 0
    %542 = vmatprep.subr.bf16.mxu0 0
    %543 = vmatpush1.bf16.msra.mxu0 0
    %544 = vmatprep.subr.bf16.mxu0 0
    %545 = vmatpush1.bf16.msra.mxu0 0
    %546 = vmatprep.subr.bf16.mxu0 0
    %547 = vmatpush1.bf16.msra.mxu0 0
    %548 = vmatprep.subr.bf16.mxu0 0
    %549 = vmatpush1.bf16.msra.mxu0 0
    %550 = vmatprep.subr.bf16.mxu0 0
    %551 = vmatpush1.bf16.msra.mxu0 0
    %552 = vmatprep.subr.bf16.mxu0 0
    %553 = vmatpush1.bf16.msra.mxu0 0
    %554 = vmatprep.subr.bf16.mxu0 0
    %555 = vmatpush1.bf16.msra.mxu0 0
    %556 = vmatprep.mubr.bf16.mxu0 0
    %557 = vmatmul.mubr.bf16.gmra.mrb[0].mxu0 0
    %v558 = vpop.f32.mrb[0].mxu0
    %v559 = vadd.f32 0.0, %v558
    %v560 = vpop.f32.mrb[0].mxu0
    %v561 = vpop.f32.mrb[0].mxu0
    %v562 = vadd.f32 0.0, %v561
    %v563 = vpop.f32.mrb[0].mxu0
    %564 = vdwg.mxu0
    %v565 = vld [vmem:[#allocation2] sm:$0xff]
    %v566 = vld [vmem:[#allocation2 + $0x8] sm:$0xff]
    %v567 = vld [vmem:[#allocation2 + $0x10] sm:$0xff]
    %v568 = vld [vmem:[#allocation2 + $0x18] sm:$0xff]
    %v569 = vld [vmem:[#allocation2 + $0x20] sm:$0xff]
    %v570 = vld [vmem:[#allocation2 + $0x28] sm:$0xff]
    %v571 = vadd.f32 %v565, %v516
    %v572 = vadd.f32 %v568, %v520
    %v573 = vxor.u32 %v571, 2147483648
    %v574 = vxor.u32 %v572, 2147483648
    %v575 = vmul.f32 %v573, 1.442695
    %v576 = vpow.pop %v575
    %v577 = vmul.f32 %v574, 1.442695
    %v578 = vpow.pop %v577
    %v579 = vadd.f32 %v576, 1.0
    %v580 = vadd.f32 %v578, 1.0
    %v581 = vrcp.pop %v579
    %v582 = vmul.f32 1.0, %v581
    %v583 = vrcp.pop %v580
    %v584 = vmul.f32 1.0, %v583
    %v585 = vadd.f32 %v566, %v518
    %v586 = vadd.f32 %v569, %v522
    %v587 = vxor.u32 %v585, 2147483648
    %v588 = vxor.u32 %v586, 2147483648
    %v589 = vmul.f32 %v587, 1.442695
    %v590 = vpow.pop %v589
    %v591 = vmul.f32 %v588, 1.442695
    %v592 = vpow.pop %v591
    %v593 = vadd.f32 %v590, 1.0
    %v594 = vadd.f32 %v592, 1.0
    %v595 = vrcp.pop %v593
    %v596 = vmul.f32 1.0, %v595
    %v597 = vrcp.pop %v594
    %v598 = vmul.f32 1.0, %v597
    %v599 = vadd.f32 %v559, %v351
    %v600 = vadd.f32 %v562, %v351
    %v601 = vmul.f32 %v582, %v599
    %v602 = vmul.f32 %v584, %v600
    %v603 = vadd.f32 %v567, %v601
    %v604 = vadd.f32 %v570, %v602
    %v605 = vtanh.pop %v603
    %v606 = vtanh.pop %v604
    %v607 = vsub.f32 1.0, %v596
    %v608 = vsub.f32 1.0, %v598
    %v609 = vmul.f32 %v607, %v605
    %v610 = vmul.f32 %v608, %v606
    %v611 = vmul.f32 %v596, 0.0
    %v612 = vmul.f32 %v598, 0.0
    %v613 = vadd.f32 %v609, %v611
    %v614 = vadd.f32 %v610, %v612
    %615 = vst [vmem:[#allocation3] sm:$0xff] %v613
    %616 = vst [vmem:[#allocation3 + $0x8] sm:$0xff] %v614
    %v617 = vpack.c.bf16 %v614, %v613
    %618 = vmatprep.subr.bf16.mxu0 %v434
    %619 = vmatpush1.bf16.msra.mxu0 %v433
    %620 = vmatprep.subr.bf16.mxu0 %v437
    %621 = vmatpush1.bf16.msra.mxu0 %v436
    %622 = vmatprep.subr.bf16.mxu0 %v440
    %623 = vmatpush1.bf16.msra.mxu0 %v439
    %624 = vmatprep.subr.bf16.mxu0 %v443
    %625 = vmatpush1.bf16.msra.mxu0 %v442
    %626 = vmatprep.subr.bf16.mxu0 %v446
    %627 = vmatpush1.bf16.msra.mxu0 %v445
    %628 = vmatprep.subr.bf16.mxu0 %v449
    %629 = vmatpush1.bf16.msra.mxu0 %v448
    %630 = vmatprep.subr.bf16.mxu0 %v452
    %631 = vmatpush1.bf16.msra.mxu0 %v451
    %632 = vmatprep.subr.bf16.mxu0 %v455
    %633 = vmatpush1.bf16.msra.mxu0 %v454
    %634 = vmatprep.subr.bf16.mxu0 0
    %635 = vmatpush1.bf16.msra.mxu0 0
    %636 = vmatprep.subr.bf16.mxu0 0
    %637 = vmatpush1.bf16.msra.mxu0 0
    %638 = vmatprep.subr.bf16.mxu0 0
    %639 = vmatpush1.bf16.msra.mxu0 0
    %640 = vmatprep.subr.bf16.mxu0 0
    %641 = vmatpush1.bf16.msra.mxu0 0
    %642 = vmatprep.subr.bf16.mxu0 0
    %643 = vmatpush1.bf16.msra.mxu0 0
    %644 = vmatprep.subr.bf16.mxu0 0
    %645 = vmatpush1.bf16.msra.mxu0 0
    %646 = vmatprep.subr.bf16.mxu0 0
    %647 = vmatpush1.bf16.msra.mxu0 0
    %648 = vmatprep.subr.bf16.mxu0 0
    %649 = vmatpush1.bf16.msra.mxu0 0
    %650 = vmatprep.mubr.bf16.mxu0 0
    %651 = vmatmul.mubr.bf16.gmra.mrb[0].mxu0 %v617
    %v652 = vpop.f32.mrb[0].mxu0
    %v653 = vadd.f32 0.0, %v652
    %v654 = vpop.f32.mrb[0].mxu0
    %v655 = vadd.f32 0.0, %v654
    %v656 = vpop.f32.mrb[0].mxu0
    %v657 = vadd.f32 0.0, %v656
    %v658 = vpop.f32.mrb[0].mxu0
    %v659 = vadd.f32 0.0, %v658
    %660 = vdwg.mxu0
    %661 = vmatprep.subr.bf16.mxu0 0
    %662 = vmatpush1.bf16.msra.mxu0 %v435
    %663 = vmatprep.subr.bf16.mxu0 0
    %664 = vmatpush1.bf16.msra.mxu0 %v438
    %665 = vmatprep.subr.bf16.mxu0 0
    %666 = vmatpush1.bf16.msra.mxu0 %v441
    %667 = vmatprep.subr.bf16.mxu0 0
    %668 = vmatpush1.bf16.msra.mxu0 %v444
    %669 = vmatprep.subr.bf16.mxu0 0
    %670 = vmatpush1.bf16.msra.mxu0 %v447
    %671 = vmatprep.subr.bf16.mxu0 0
    %672 = vmatpush1.bf16.msra.mxu0 %v450
    %673 = vmatprep.subr.bf16.mxu0 0
    %674 = vmatpush1.bf16.msra.mxu0 %v453
    %675 = vmatprep.subr.bf16.mxu0 0
    %676 = vmatpush1.bf16.msra.mxu0 %v456
    %677 = vmatprep.subr.bf16.mxu0 0
    %678 = vmatpush1.bf16.msra.mxu0 0
    %679 = vmatprep.subr.bf16.mxu0 0
    %680 = vmatpush1.bf16.msra.mxu0 0
    %681 = vmatprep.subr.bf16.mxu0 0
    %682 = vmatpush1.bf16.msra.mxu0 0
    %683 = vmatprep.subr.bf16.mxu0 0
    %684 = vmatpush1.bf16.msra.mxu0 0
    %685 = vmatprep.subr.bf16.mxu0 0
    %686 = vmatpush1.bf16.msra.mxu0 0
    %687 = vmatprep.subr.bf16.mxu0 0
    %688 = vmatpush1.bf16.msra.mxu0 0
    %689 = vmatprep.subr.bf16.mxu0 0
    %690 = vmatpush1.bf16.msra.mxu0 0
    %691 = vmatprep.subr.bf16.mxu0 0
    %692 = vmatpush1.bf16.msra.mxu0 0
    %693 = vmatprep.mubr.bf16.mxu0 0
    %694 = vmatmul.mubr.bf16.gmra.mrb[0].mxu0 %v617
    %v695 = vpop.f32.mrb[0].mxu0
    %v696 = vadd.f32 0.0, %v695
    %v697 = vpop.f32.mrb[0].mxu0
    %v698 = vpop.f32.mrb[0].mxu0
    %v699 = vadd.f32 0.0, %v698
    %v700 = vpop.f32.mrb[0].mxu0
    %701 = vdwg.mxu0
    %s702 = scalar_lea.vmem [#allocation2], 48
    %v703 = vld [vmem:[%s702] sm:$0xff]
    %v704 = vld [vmem:[%s702 + $0x8] sm:$0xff]
    %v705 = vld [vmem:[%s702 + $0x10] sm:$0xff]
    %v706 = vld [vmem:[%s702 + $0x18] sm:$0xff]
    %v707 = vld [vmem:[%s702 + $0x20] sm:$0xff]
    %v708 = vld [vmem:[%s702 + $0x28] sm:$0xff]
    %v709 = vadd.f32 %v703, %v653
    %v710 = vadd.f32 %v706, %v657
    %v711 = vxor.u32 %v709, 2147483648
    %v712 = vxor.u32 %v710, 2147483648
    %v713 = vmul.f32 %v711, 1.442695
    %v714 = vpow.pop %v713
    %v715 = vmul.f32 %v712, 1.442695
    %v716 = vpow.pop %v715
    %v717 = vadd.f32 %v714, 1.0
    %v718 = vadd.f32 %v716, 1.0
    %v719 = vrcp.pop %v717
    %v720 = vmul.f32 1.0, %v719
    %v721 = vrcp.pop %v718
    %v722 = vmul.f32 1.0, %v721
    %v723 = vadd.f32 %v704, %v655
    %v724 = vadd.f32 %v707, %v659
    %v725 = vxor.u32 %v723, 2147483648
    %v726 = vxor.u32 %v724, 2147483648
    %v727 = vmul.f32 %v725, 1.442695
    %v728 = vpow.pop %v727
    %v729 = vmul.f32 %v726, 1.442695
    %v730 = vpow.pop %v729
    %v731 = vadd.f32 %v728, 1.0
    %v732 = vadd.f32 %v730, 1.0
    %v733 = vrcp.pop %v731
    %v734 = vmul.f32 1.0, %v733
    %v735 = vrcp.pop %v732
    %v736 = vmul.f32 1.0, %v735
    %v737 = vadd.f32 %v696, %v351
    %v738 = vadd.f32 %v699, %v351
    %v739 = vmul.f32 %v720, %v737
    %v740 = vmul.f32 %v722, %v738
    %v741 = vadd.f32 %v705, %v739
    %v742 = vadd.f32 %v708, %v740
    %v743 = vtanh.pop %v741
    %v744 = vtanh.pop %v742
    %v745 = vsub.f32 1.0, %v734
    %v746 = vsub.f32 1.0, %v736
    %v747 = vmul.f32 %v745, %v743
    %v748 = vmul.f32 %v746, %v744
    %v749 = vmul.f32 %v734, %v613
    %v750 = vmul.f32 %v736, %v614
    %v751 = vadd.f32 %v747, %v749
    %v752 = vadd.f32 %v748, %v750
    %s753 = scalar_lea.vmem [#allocation3], 16
    %754 = vst [vmem:[%s753] sm:$0xff] %v751
    %755 = vst [vmem:[%s753 + $0x8] sm:$0xff] %v752
    %v756 = vpack.c.bf16 %v752, %v751
    %757 = vmatprep.subr.bf16.mxu0 %v434
    %758 = vmatpush1.bf16.msra.mxu0 %v433
    %759 = vmatprep.subr.bf16.mxu0 %v437
    %760 = vmatpush1.bf16.msra.mxu0 %v436
    %761 = vmatprep.subr.bf16.mxu0 %v440
    %762 = vmatpush1.bf16.msra.mxu0 %v439
    %763 = vmatprep.subr.bf16.mxu0 %v443
    %764 = vmatpush1.bf16.msra.mxu0 %v442
    %765 = vmatprep.subr.bf16.mxu0 %v446
    %766 = vmatpush1.bf16.msra.mxu0 %v445
    %767 = vmatprep.subr.bf16.mxu0 %v449
    %768 = vmatpush1.bf16.msra.mxu0 %v448
    %769 = vmatprep.subr.bf16.mxu0 %v452
    %770 = vmatpush1.bf16.msra.mxu0 %v451
    %771 = vmatprep.subr.bf16.mxu0 %v455
    %772 = vmatpush1.bf16.msra.mxu0 %v454
    %773 = vmatprep.subr.bf16.mxu0 0
    %774 = vmatpush1.bf16.msra.mxu0 0
    %775 = vmatprep.subr.bf16.mxu0 0
    %776 = vmatpush1.bf16.msra.mxu0 0
    %777 = vmatprep.subr.bf16.mxu0 0
    %778 = vmatpush1.bf16.msra.mxu0 0
    %779 = vmatprep.subr.bf16.mxu0 0
    %780 = vmatpush1.bf16.msra.mxu0 0
    %781 = vmatprep.subr.bf16.mxu0 0
    %782 = vmatpush1.bf16.msra.mxu0 0
    %783 = vmatprep.subr.bf16.mxu0 0
    %784 = vmatpush1.bf16.msra.mxu0 0
    %785 = vmatprep.subr.bf16.mxu0 0
    %786 = vmatpush1.bf16.msra.mxu0 0
    %787 = vmatprep.subr.bf16.mxu0 0
    %788 = vmatpush1.bf16.msra.mxu0 0
    %789 = vmatprep.mubr.bf16.mxu0 0
    %790 = vmatmul.mubr.bf16.gmra.mrb[0].mxu0 %v756
    %v791 = vpop.f32.mrb[0].mxu0
    %v792 = vadd.f32 0.0, %v791
    %v793 = vpop.f32.mrb[0].mxu0
    %v794 = vadd.f32 0.0, %v793
    %v795 = vpop.f32.mrb[0].mxu0
    %v796 = vadd.f32 0.0, %v795
    %v797 = vpop.f32.mrb[0].mxu0
    %v798 = vadd.f32 0.0, %v797
    %799 = vdwg.mxu0
    %800 = vmatprep.subr.bf16.mxu0 0
    %801 = vmatpush1.bf16.msra.mxu0 %v435
    %802 = vmatprep.subr.bf16.mxu0 0
    %803 = vmatpush1.bf16.msra.mxu0 %v438
    %804 = vmatprep.subr.bf16.mxu0 0
    %805 = vmatpush1.bf16.msra.mxu0 %v441
    %806 = vmatprep.subr.bf16.mxu0 0
    %807 = vmatpush1.bf16.msra.mxu0 %v444
    %808 = vmatprep.subr.bf16.mxu0 0
    %809 = vmatpush1.bf16.msra.mxu0 %v447
    %810 = vmatprep.subr.bf16.mxu0 0
    %811 = vmatpush1.bf16.msra.mxu0 %v450
    %812 = vmatprep.subr.bf16.mxu0 0
    %813 = vmatpush1.bf16.msra.mxu0 %v453
    %814 = vmatprep.subr.bf16.mxu0 0
    %815 = vmatpush1.bf16.msra.mxu0 %v456
    %816 = vmatprep.subr.bf16.mxu0 0
    %817 = vmatpush1.bf16.msra.mxu0 0
    %818 = vmatprep.subr.bf16.mxu0 0
    %819 = vmatpush1.bf16.msra.mxu0 0
    %820 = vmatprep.subr.bf16.mxu0 0
    %821 = vmatpush1.bf16.msra.mxu0 0
    %822 = vmatprep.subr.bf16.mxu0 0
    %823 = vmatpush1.bf16.msra.mxu0 0
    %824 = vmatprep.subr.bf16.mxu0 0
    %825 = vmatpush1.bf16.msra.mxu0 0
    %826 = vmatprep.subr.bf16.mxu0 0
    %827 = vmatpush1.bf16.msra.mxu0 0
    %828 = vmatprep.subr.bf16.mxu0 0
    %829 = vmatpush1.bf16.msra.mxu0 0
    %830 = vmatprep.subr.bf16.mxu0 0
    %831 = vmatpush1.bf16.msra.mxu0 0
    %832 = vmatprep.mubr.bf16.mxu0 0
    %833 = vmatmul.mubr.bf16.gmra.mrb[0].mxu0 %v756
    %v834 = vpop.f32.mrb[0].mxu0
    %v835 = vadd.f32 0.0, %v834
    %v836 = vpop.f32.mrb[0].mxu0
    %v837 = vpop.f32.mrb[0].mxu0
    %v838 = vadd.f32 0.0, %v837
    %v839 = vpop.f32.mrb[0].mxu0
    %840 = vdwg.mxu0
    %s841 = scalar_lea.vmem [#allocation2], 96
    %v842 = vld [vmem:[%s841] sm:$0xff]
    %v843 = vld [vmem:[%s841 + $0x8] sm:$0xff]
    %v844 = vld [vmem:[%s841 + $0x10] sm:$0xff]
    %v845 = vld [vmem:[%s841 + $0x18] sm:$0xff]
    %v846 = vld [vmem:[%s841 + $0x20] sm:$0xff]
    %v847 = vld [vmem:[%s841 + $0x28] sm:$0xff]
    %v848 = vadd.f32 %v842, %v792
    %v849 = vadd.f32 %v845, %v796
    %v850 = vxor.u32 %v848, 2147483648
    %v851 = vxor.u32 %v849, 2147483648
    %v852 = vmul.f32 %v850, 1.442695
    %v853 = vpow.pop %v852
    %v854 = vmul.f32 %v851, 1.442695
    %v855 = vpow.pop %v854
    %v856 = vadd.f32 %v853, 1.0
    %v857 = vadd.f32 %v855, 1.0
    %v858 = vrcp.pop %v856
    %v859 = vmul.f32 1.0, %v858
    %v860 = vrcp.pop %v857
    %v861 = vmul.f32 1.0, %v860
    %v862 = vadd.f32 %v843, %v794
    %v863 = vadd.f32 %v846, %v798
    %v864 = vxor.u32 %v862, 2147483648
    %v865 = vxor.u32 %v863, 2147483648
    %v866 = vmul.f32 %v864, 1.442695
    %v867 = vpow.pop %v866
    %v868 = vmul.f32 %v865, 1.442695
    %v869 = vpow.pop %v868
    %v870 = vadd.f32 %v867, 1.0
    %v871 = vadd.f32 %v869, 1.0
    %v872 = vrcp.pop %v870
    %v873 = vmul.f32 1.0, %v872
    %v874 = vrcp.pop %v871
    %v875 = vmul.f32 1.0, %v874
    %v876 = vadd.f32 %v835, %v351
    %v877 = vadd.f32 %v838, %v351
    %v878 = vmul.f32 %v859, %v876
    %v879 = vmul.f32 %v861, %v877
    %v880 = vadd.f32 %v844, %v878
    %v881 = vadd.f32 %v847, %v879
    %v882 = vtanh.pop %v880
    %v883 = vtanh.pop %v881
    %v884 = vsub.f32 1.0, %v873
    %v885 = vsub.f32 1.0, %v875
    %v886 = vmul.f32 %v884, %v882
    %v887 = vmul.f32 %v885, %v883
    %v888 = vmul.f32 %v873, %v751
    %v889 = vmul.f32 %v875, %v752
    %v890 = vadd.f32 %v886, %v888
    %v891 = vadd.f32 %v887, %v889
    %s892 = scalar_lea.vmem [#allocation3], 32
    %893 = vst [vmem:[%s892] sm:$0xff] %v890
    %894 = vst [vmem:[%s892 + $0x8] sm:$0xff] %v891
    %v895 = vpack.c.bf16 %v891, %v890
    %896 = vmatprep.subr.bf16.mxu0 %v434
    %897 = vmatpush1.bf16.msra.mxu0 %v433
    %898 = vmatprep.subr.bf16.mxu0 %v437
    %899 = vmatpush1.bf16.msra.mxu0 %v436
    %900 = vmatprep.subr.bf16.mxu0 %v440
    %901 = vmatpush1.bf16.msra.mxu0 %v439
    %902 = vmatprep.subr.bf16.mxu0 %v443
    %903 = vmatpush1.bf16.msra.mxu0 %v442
    %904 = vmatprep.subr.bf16.mxu0 %v446
    %905 = vmatpush1.bf16.msra.mxu0 %v445
    %906 = vmatprep.subr.bf16.mxu0 %v449
    %907 = vmatpush1.bf16.msra.mxu0 %v448
    %908 = vmatprep.subr.bf16.mxu0 %v452
    %909 = vmatpush1.bf16.msra.mxu0 %v451
    %910 = vmatprep.subr.bf16.mxu0 %v455
    %911 = vmatpush1.bf16.msra.mxu0 %v454
    %912 = vmatprep.subr.bf16.mxu0 0
    %913 = vmatpush1.bf16.msra.mxu0 0
    %914 = vmatprep.subr.bf16.mxu0 0
    %915 = vmatpush1.bf16.msra.mxu0 0
    %916 = vmatprep.subr.bf16.mxu0 0
    %917 = vmatpush1.bf16.msra.mxu0 0
    %918 = vmatprep.subr.bf16.mxu0 0
    %919 = vmatpush1.bf16.msra.mxu0 0
    %920 = vmatprep.subr.bf16.mxu0 0
    %921 = vmatpush1.bf16.msra.mxu0 0
    %922 = vmatprep.subr.bf16.mxu0 0
    %923 = vmatpush1.bf16.msra.mxu0 0
    %924 = vmatprep.subr.bf16.mxu0 0
    %925 = vmatpush1.bf16.msra.mxu0 0
    %926 = vmatprep.subr.bf16.mxu0 0
    %927 = vmatpush1.bf16.msra.mxu0 0
    %928 = vmatprep.mubr.bf16.mxu0 0
    %929 = vmatmul.mubr.bf16.gmra.mrb[0].mxu0 %v895
    %v930 = vpop.f32.mrb[0].mxu0
    %v931 = vadd.f32 0.0, %v930
    %v932 = vpop.f32.mrb[0].mxu0
    %v933 = vadd.f32 0.0, %v932
    %v934 = vpop.f32.mrb[0].mxu0
    %v935 = vadd.f32 0.0, %v934
    %v936 = vpop.f32.mrb[0].mxu0
    %v937 = vadd.f32 0.0, %v936
    %938 = vdwg.mxu0
    %939 = vmatprep.subr.bf16.mxu0 0
    %940 = vmatpush1.bf16.msra.mxu0 %v435
    %941 = vmatprep.subr.bf16.mxu0 0
    %942 = vmatpush1.bf16.msra.mxu0 %v438
    %943 = vmatprep.subr.bf16.mxu0 0
    %944 = vmatpush1.bf16.msra.mxu0 %v441
    %945 = vmatprep.subr.bf16.mxu0 0
    %946 = vmatpush1.bf16.msra.mxu0 %v444
    %947 = vmatprep.subr.bf16.mxu0 0
    %948 = vmatpush1.bf16.msra.mxu0 %v447
    %949 = vmatprep.subr.bf16.mxu0 0
    %950 = vmatpush1.bf16.msra.mxu0 %v450
    %951 = vmatprep.subr.bf16.mxu0 0
    %952 = vmatpush1.bf16.msra.mxu0 %v453
    %953 = vmatprep.subr.bf16.mxu0 0
    %954 = vmatpush1.bf16.msra.mxu0 %v456
    %955 = vmatprep.subr.bf16.mxu0 0
    %956 = vmatpush1.bf16.msra.mxu0 0
    %957 = vmatprep.subr.bf16.mxu0 0
    %958 = vmatpush1.bf16.msra.mxu0 0
    %959 = vmatprep.subr.bf16.mxu0 0
    %960 = vmatpush1.bf16.msra.mxu0 0
    %961 = vmatprep.subr.bf16.mxu0 0
    %962 = vmatpush1.bf16.msra.mxu0 0
    %963 = vmatprep.subr.bf16.mxu0 0
    %964 = vmatpush1.bf16.msra.mxu0 0
    %965 = vmatprep.subr.bf16.mxu0 0
    %966 = vmatpush1.bf16.msra.mxu0 0
    %967 = vmatprep.subr.bf16.mxu0 0
    %968 = vmatpush1.bf16.msra.mxu0 0
    %969 = vmatprep.subr.bf16.mxu0 0
    %970 = vmatpush1.bf16.msra.mxu0 0
    %971 = vmatprep.mubr.bf16.mxu0 0
    %972 = vmatmul.mubr.bf16.gmra.mrb[0].mxu0 %v895
    %v973 = vpop.f32.mrb[0].mxu0
    %v974 = vadd.f32 0.0, %v973
    %v975 = vpop.f32.mrb[0].mxu0
    %v976 = vpop.f32.mrb[0].mxu0
    %v977 = vadd.f32 0.0, %v976
    %v978 = vpop.f32.mrb[0].mxu0
    %979 = vdwg.mxu0
    %s980 = scalar_lea.vmem [#allocation2], 144
    %v981 = vld [vmem:[%s980] sm:$0xff]
    %v982 = vld [vmem:[%s980 + $0x8] sm:$0xff]
    %v983 = vld [vmem:[%s980 + $0x10] sm:$0xff]
    %v984 = vld [vmem:[%s980 + $0x18] sm:$0xff]
    %v985 = vld [vmem:[%s980 + $0x20] sm:$0xff]
    %v986 = vld [vmem:[%s980 + $0x28] sm:$0xff]
    %v987 = vadd.f32 %v981, %v931
    %v988 = vadd.f32 %v984, %v935
    %v989 = vxor.u32 %v987, 2147483648
    %v990 = vxor.u32 %v988, 2147483648
    %v991 = vmul.f32 %v989, 1.442695
    %v992 = vpow.pop %v991
    %v993 = vmul.f32 %v990, 1.442695
    %v994 = vpow.pop %v993
    %v995 = vadd.f32 %v992, 1.0
    %v996 = vadd.f32 %v994, 1.0
    %v997 = vrcp.pop %v995
    %v998 = vmul.f32 1.0, %v997
    %v999 = vrcp.pop %v996
    %v1000 = vmul.f32 1.0, %v999
    %v1001 = vadd.f32 %v982, %v933
    %v1002 = vadd.f32 %v985, %v937
    %v1003 = vxor.u32 %v1001, 2147483648
    %v1004 = vxor.u32 %v1002, 2147483648
    %v1005 = vmul.f32 %v1003, 1.442695
    %v1006 = vpow.pop %v1005
    %v1007 = vmul.f32 %v1004, 1.442695
    %v1008 = vpow.pop %v1007
    %v1009 = vadd.f32 %v1006, 1.0
    %v1010 = vadd.f32 %v1008, 1.0
    %v1011 = vrcp.pop %v1009
    %v1012 = vmul.f32 1.0, %v1011
    %v1013 = vrcp.pop %v1010
    %v1014 = vmul.f32 1.0, %v1013
    %v1015 = vadd.f32 %v974, %v351
    %v1016 = vadd.f32 %v977, %v351
    %v1017 = vmul.f32 %v998, %v1015
    %v1018 = vmul.f32 %v1000, %v1016
    %v1019 = vadd.f32 %v983, %v1017
    %v1020 = vadd.f32 %v986, %v1018
    %v1021 = vtanh.pop %v1019
    %v1022 = vtanh.pop %v1020
    %v1023 = vsub.f32 1.0, %v1012
    %v1024 = vsub.f32 1.0, %v1014
    %v1025 = vmul.f32 %v1023, %v1021
    %v1026 = vmul.f32 %v1024, %v1022
    %v1027 = vmul.f32 %v1012, %v890
    %v1028 = vmul.f32 %v1014, %v891
    %v1029 = vadd.f32 %v1025, %v1027
    %v1030 = vadd.f32 %v1026, %v1028
    %s1031 = scalar_lea.vmem [#allocation3], 48
    %1032 = vst [vmem:[%s1031] sm:$0xff] %v1029
    %1033 = vst [vmem:[%s1031 + $0x8] sm:$0xff] %v1030
    %v1034 = vld [vmem:[#allocation3] sm:$0xff]
    %v1035 = vld [vmem:[#allocation3 + $0x8] sm:$0xff]
    %v1036 = vld [vmem:[#allocation3 + $0x10] sm:$0xff]
    %v1037 = vld [vmem:[#allocation3 + $0x18] sm:$0xff]
    %v1038 = vld [vmem:[#allocation3 + $0x20] sm:$0xff]
    %v1039 = vld [vmem:[#allocation3 + $0x28] sm:$0xff]
    %v1040 = vld [vmem:[#allocation3 + $0x30] sm:$0xff]
    %v1041 = vld [vmem:[#allocation3 + $0x38] sm:$0xff]
    %v1042 = vpack.c.bf16 %v1035, %v1034
    %v1043 = vpack.c.bf16 %v1037, %v1036
    %v1044 = vpack.c.bf16 %v1039, %v1038
    %v1045 = vpack.c.bf16 %v1041, %v1040
    %v1046 = vld [vmem:[#allocation6] sm:$0xff]
    %v1047 = vld [vmem:[#allocation6 + $0x8] sm:$0xf]
    %v1048 = vld [vmem:[#allocation6 + $0xc] sm:$0xff]
    %v1049 = vld [vmem:[#allocation6 + $0x14] sm:$0xf]
    %v1050 = vld [vmem:[#allocation6 + $0x18] sm:$0xff]
    %v1051 = vld [vmem:[#allocation6 + $0x20] sm:$0xf]
    %v1052 = vld [vmem:[#allocation6 + $0x24] sm:$0xff]
    %v1053 = vld [vmem:[#allocation6 + $0x2c] sm:$0xf]
    %v1054 = vld [vmem:[#allocation6 + $0x30] sm:$0xff]
    %v1055 = vld [vmem:[#allocation6 + $0x38] sm:$0xf]
    %v1056 = vld [vmem:[#allocation6 + $0x3c] sm:$0xff]
    %v1057 = vld [vmem:[#allocation6 + $0x44] sm:$0xf]
    %v1058 = vld [vmem:[#allocation6 + $0x48] sm:$0xff]
    %v1059 = vld [vmem:[#allocation6 + $0x50] sm:$0xf]
    %v1060 = vld [vmem:[#allocation6 + $0x54] sm:$0xff]
    %v1061 = vld [vmem:[#allocation6 + $0x5c] sm:$0xf]
    %v1062 = vld [vmem:[#allocation6 + $0x60] sm:$0xff]
    %v1063 = vld [vmem:[#allocation6 + $0x68] sm:$0xf]
    %v1064 = vld [vmem:[#allocation6 + $0x6c] sm:$0xff]
    %v1065 = vld [vmem:[#allocation6 + $0x74] sm:$0xf]
    %v1066 = vld [vmem:[#allocation6 + $0x78] sm:$0xff]
    %v1067 = vld [vmem:[#allocation6 + $0x80] sm:$0xf]
    %v1068 = vld [vmem:[#allocation6 + $0x84] sm:$0xff]
    %v1069 = vld [vmem:[#allocation6 + $0x8c] sm:$0xf]
    %v1070 = vld [vmem:[#allocation6 + $0x90] sm:$0xff]
    %v1071 = vld [vmem:[#allocation6 + $0x98] sm:$0xf]
    %v1072 = vld [vmem:[#allocation6 + $0x9c] sm:$0xff]
    %v1073 = vld [vmem:[#allocation6 + $0xa4] sm:$0xf]
    %v1074 = vld [vmem:[#allocation6 + $0xa8] sm:$0xff]
    %v1075 = vld [vmem:[#allocation6 + $0xb0] sm:$0xf]
    %v1076 = vld [vmem:[#allocation6 + $0xb4] sm:$0xff]
    %v1077 = vld [vmem:[#allocation6 + $0xbc] sm:$0xf]
    %v1078 = vld [vmem:[%s7] sm:$0x7]
    %v1080 = vlaneseq
    %v1081 = vshrl.u32 %v1080, 7
    %v1082 = vsub.s32 0, %v1081
    %v1083 = vrot.slane %v1078, %v1082
    %v1084 = vlaneseq
    %v1085 = vshrl.u32 %v1084, 7
    %v1086 = vsub.s32 1, %v1085
    %v1087 = vrot.slane %v1078, %v1086
    %v1088 = vlaneseq
    %v1089 = vshrl.u32 %v1088, 7
    %v1090 = vsub.s32 2, %v1089
    %v1091 = vrot.slane %v1078, %v1090
    %v1127 = vunpack.c.l.b16 %v1046
    %v1128 = vunpack.c.h.b16 %v1046
    %v1129 = vunpack.c.l.b16 %v1047
    %v1130 = vunpack.c.l.b16 %v1048
    %v1131 = vunpack.c.h.b16 %v1048
    %v1132 = vunpack.c.l.b16 %v1049
    %v1133 = vunpack.c.l.b16 %v1050
    %v1134 = vunpack.c.h.b16 %v1050
    %v1135 = vunpack.c.l.b16 %v1051
    %v1136 = vunpack.c.l.b16 %v1052
    %v1137 = vunpack.c.h.b16 %v1052
    %v1138 = vunpack.c.l.b16 %v1053
    %v1139 = vunpack.c.l.b16 %v1054
    %v1140 = vunpack.c.h.b16 %v1054
    %v1141 = vunpack.c.l.b16 %v1055
    %v1142 = vunpack.c.l.b16 %v1056
    %v1143 = vunpack.c.h.b16 %v1056
    %v1144 = vunpack.c.l.b16 %v1057
    %v1145 = vunpack.c.l.b16 %v1058
    %v1146 = vunpack.c.h.b16 %v1058
    %v1147 = vunpack.c.l.b16 %v1059
    %v1148 = vunpack.c.l.b16 %v1060
    %v1149 = vunpack.c.h.b16 %v1060
    %v1150 = vunpack.c.l.b16 %v1061
    %v1151 = vunpack.c.l.b16 %v1062
    %v1152 = vunpack.c.h.b16 %v1062
    %v1153 = vunpack.c.l.b16 %v1063
    %v1154 = vunpack.c.l.b16 %v1064
    %v1155 = vunpack.c.h.b16 %v1064
    %v1156 = vunpack.c.l.b16 %v1065
    %v1157 = vunpack.c.l.b16 %v1066
    %v1158 = vunpack.c.h.b16 %v1066
    %v1159 = vunpack.c.l.b16 %v1067
    %v1160 = vunpack.c.l.b16 %v1068
    %v1161 = vunpack.c.h.b16 %v1068
    %v1162 = vunpack.c.l.b16 %v1069
    %v1163 = vunpack.c.l.b16 %v1070
    %v1164 = vunpack.c.h.b16 %v1070
    %v1165 = vunpack.c.l.b16 %v1071
    %v1166 = vunpack.c.l.b16 %v1072
    %v1167 = vunpack.c.h.b16 %v1072
    %v1168 = vunpack.c.l.b16 %v1073
    %v1169 = vunpack.c.l.b16 %v1074
    %v1170 = vunpack.c.h.b16 %v1074
    %v1171 = vunpack.c.l.b16 %v1075
    %v1172 = vunpack.c.l.b16 %v1076
    %v1173 = vunpack.c.h.b16 %v1076
    %v1174 = vunpack.c.l.b16 %v1077
    %v1175 = vpack.c.b16 %v1130, %v1127
    %v1176 = vpack.c.b16 %v1131, %v1128
    %v1177 = vpack.c.b16 %v1132, %v1129
    %v1178 = vpack.c.b16 %v1136, %v1133
    %v1179 = vpack.c.b16 %v1137, %v1134
    %v1180 = vpack.c.b16 %v1138, %v1135
    %v1181 = vpack.c.b16 %v1142, %v1139
    %v1182 = vpack.c.b16 %v1143, %v1140
    %v1183 = vpack.c.b16 %v1144, %v1141
    %v1184 = vpack.c.b16 %v1148, %v1145
    %v1185 = vpack.c.b16 %v1149, %v1146
    %v1186 = vpack.c.b16 %v1150, %v1147
    %v1187 = vpack.c.b16 %v1154, %v1151
    %v1188 = vpack.c.b16 %v1155, %v1152
    %v1189 = vpack.c.b16 %v1156, %v1153
    %v1190 = vpack.c.b16 %v1160, %v1157
    %v1191 = vpack.c.b16 %v1161, %v1158
    %v1192 = vpack.c.b16 %v1162, %v1159
    %v1193 = vpack.c.b16 %v1166, %v1163
    %v1194 = vpack.c.b16 %v1167, %v1164
    %v1195 = vpack.c.b16 %v1168, %v1165
    %v1196 = vpack.c.b16 %v1172, %v1169
    %v1197 = vpack.c.b16 %v1173, %v1170
    %v1198 = vpack.c.b16 %v1174, %v1171
    %1223 = vmatprep.subr.bf16.mxu0 %v1176
    %1224 = vmatpush1.bf16.msra.mxu0 %v1175
    %1225 = vmatprep.subr.bf16.mxu0 %v1179
    %1226 = vmatpush1.bf16.msra.mxu0 %v1178
    %1227 = vmatprep.subr.bf16.mxu0 %v1182
    %1228 = vmatpush1.bf16.msra.mxu0 %v1181
    %1229 = vmatprep.subr.bf16.mxu0 %v1185
    %1230 = vmatpush1.bf16.msra.mxu0 %v1184
    %1231 = vmatprep.subr.bf16.mxu0 %v1188
    %1232 = vmatpush1.bf16.msra.mxu0 %v1187
    %1233 = vmatprep.subr.bf16.mxu0 %v1191
    %1234 = vmatpush1.bf16.msra.mxu0 %v1190
    %1235 = vmatprep.subr.bf16.mxu0 %v1194
    %1236 = vmatpush1.bf16.msra.mxu0 %v1193
    %1237 = vmatprep.subr.bf16.mxu0 %v1197
    %1238 = vmatpush1.bf16.msra.mxu0 %v1196
    %1239 = vmatprep.subr.bf16.mxu0 0
    %1240 = vmatpush1.bf16.msra.mxu0 0
    %1241 = vmatprep.subr.bf16.mxu0 0
    %1242 = vmatpush1.bf16.msra.mxu0 0
    %1243 = vmatprep.subr.bf16.mxu0 0
    %1244 = vmatpush1.bf16.msra.mxu0 0
    %1245 = vmatprep.subr.bf16.mxu0 0
    %1246 = vmatpush1.bf16.msra.mxu0 0
    %1247 = vmatprep.subr.bf16.mxu0 0
    %1248 = vmatpush1.bf16.msra.mxu0 0
    %1249 = vmatprep.subr.bf16.mxu0 0
    %1250 = vmatpush1.bf16.msra.mxu0 0
    %1251 = vmatprep.subr.bf16.mxu0 0
    %1252 = vmatpush1.bf16.msra.mxu0 0
    %1253 = vmatprep.subr.bf16.mxu0 0
    %1254 = vmatpush1.bf16.msra.mxu0 0
    %1255 = vmatprep.mubr.bf16.mxu0 0
    %1256 = vmatmul.mubr.bf16.gmra.mrb[0].mxu0 %v1042
    %v1257 = vpop.f32.mrb[0].mxu0
    %v1258 = vadd.f32 %v1083, %v1257
    %v1259 = vpop.f32.mrb[0].mxu0
    %v1260 = vadd.f32 %v1087, %v1259
    %v1261 = vpop.f32.mrb[0].mxu0
    %v1262 = vadd.f32 %v1083, %v1261
    %v1263 = vpop.f32.mrb[0].mxu0
    %v1264 = vadd.f32 %v1087, %v1263
    %1265 = vmatprep.mubr.bf16.mxu0 0
    %1266 = vmatmul.mubr.bf16.gmra.mrb[0].mxu0 %v1043
    %v1267 = vpop.f32.mrb[0].mxu0
    %v1268 = vadd.f32 %v1083, %v1267
    %v1269 = vpop.f32.mrb[0].mxu0
    %v1270 = vadd.f32 %v1087, %v1269
    %v1271 = vpop.f32.mrb[0].mxu0
    %v1272 = vadd.f32 %v1083, %v1271
    %v1273 = vpop.f32.mrb[0].mxu0
    %v1274 = vadd.f32 %v1087, %v1273
    %1275 = vmatprep.mubr.bf16.mxu0 0
    %1276 = vmatmul.mubr.bf16.gmra.mrb[0].mxu0 %v1044
    %v1277 = vpop.f32.mrb[0].mxu0
    %v1278 = vadd.f32 %v1083, %v1277
    %v1279 = vpop.f32.mrb[0].mxu0
    %v1280 = vadd.f32 %v1087, %v1279
    %v1281 = vpop.f32.mrb[0].mxu0
    %v1282 = vadd.f32 %v1083, %v1281
    %v1283 = vpop.f32.mrb[0].mxu0
    %v1284 = vadd.f32 %v1087, %v1283
    %1285 = vmatprep.mubr.bf16.mxu0 0
    %1286 = vmatmul.mubr.bf16.gmra.mrb[0].mxu0 %v1045
    %v1287 = vpop.f32.mrb[0].mxu0
    %v1288 = vadd.f32 %v1083, %v1287
    %v1289 = vpop.f32.mrb[0].mxu0
    %v1290 = vadd.f32 %v1087, %v1289
    %v1291 = vpop.f32.mrb[0].mxu0
    %v1292 = vadd.f32 %v1083, %v1291
    %v1293 = vpop.f32.mrb[0].mxu0
    %v1294 = vadd.f32 %v1087, %v1293
    %1295 = vdwg.mxu0
    %1296 = vmatprep.subr.bf16.mxu0 0
    %1297 = vmatpush1.bf16.msra.mxu0 %v1177
    %1298 = vmatprep.subr.bf16.mxu0 0
    %1299 = vmatpush1.bf16.msra.mxu0 %v1180
    %1300 = vmatprep.subr.bf16.mxu0 0
    %1301 = vmatpush1.bf16.msra.mxu0 %v1183
    %1302 = vmatprep.subr.bf16.mxu0 0
    %1303 = vmatpush1.bf16.msra.mxu0 %v1186
    %1304 = vmatprep.subr.bf16.mxu0 0
    %1305 = vmatpush1.bf16.msra.mxu0 %v1189
    %1306 = vmatprep.subr.bf16.mxu0 0
    %1307 = vmatpush1.bf16.msra.mxu0 %v1192
    %1308 = vmatprep.subr.bf16.mxu0 0
    %1309 = vmatpush1.bf16.msra.mxu0 %v1195
    %1310 = vmatprep.subr.bf16.mxu0 0
    %1311 = vmatpush1.bf16.msra.mxu0 %v1198
    %1312 = vmatprep.subr.bf16.mxu0 0
    %1313 = vmatpush1.bf16.msra.mxu0 0
    %1314 = vmatprep.subr.bf16.mxu0 0
    %1315 = vmatpush1.bf16.msra.mxu0 0
    %1316 = vmatprep.subr.bf16.mxu0 0
    %1317 = vmatpush1.bf16.msra.mxu0 0
    %1318 = vmatprep.subr.bf16.mxu0 0
    %1319 = vmatpush1.bf16.msra.mxu0 0
    %1320 = vmatprep.subr.bf16.mxu0 0
    %1321 = vmatpush1.bf16.msra.mxu0 0
    %1322 = vmatprep.subr.bf16.mxu0 0
    %1323 = vmatpush1.bf16.msra.mxu0 0
    %1324 = vmatprep.subr.bf16.mxu0 0
    %1325 = vmatpush1.bf16.msra.mxu0 0
    %1326 = vmatprep.subr.bf16.mxu0 0
    %1327 = vmatpush1.bf16.msra.mxu0 0
    %1328 = vmatprep.mubr.bf16.mxu0 0
    %1329 = vmatmul.mubr.bf16.gmra.mrb[0].mxu0 %v1042
    %v1330 = vpop.f32.mrb[0].mxu0
    %v1331 = vadd.f32 %v1091, %v1330
    %v1332 = vpop.f32.mrb[0].mxu0
    %v1333 = vpop.f32.mrb[0].mxu0
    %v1334 = vadd.f32 %v1091, %v1333
    %v1335 = vpop.f32.mrb[0].mxu0
    %1336 = vmatprep.mubr.bf16.mxu0 0
    %1337 = vmatmul.mubr.bf16.gmra.mrb[0].mxu0 %v1043
    %v1338 = vpop.f32.mrb[0].mxu0
    %v1339 = vadd.f32 %v1091, %v1338
    %v1340 = vpop.f32.mrb[0].mxu0
    %v1341 = vpop.f32.mrb[0].mxu0
    %v1342 = vadd.f32 %v1091, %v1341
    %v1343 = vpop.f32.mrb[0].mxu0
    %1344 = vmatprep.mubr.bf16.mxu0 0
    %1345 = vmatmul.mubr.bf16.gmra.mrb[0].mxu0 %v1044
    %v1346 = vpop.f32.mrb[0].mxu0
    %v1347 = vadd.f32 %v1091, %v1346
    %v1348 = vpop.f32.mrb[0].mxu0
    %v1349 = vpop.f32.mrb[0].mxu0
    %v1350 = vadd.f32 %v1091, %v1349
    %v1351 = vpop.f32.mrb[0].mxu0
    %1352 = vmatprep.mubr.bf16.mxu0 0
    %1353 = vmatmul.mubr.bf16.gmra.mrb[0].mxu0 %v1045
    %v1354 = vpop.f32.mrb[0].mxu0
    %v1355 = vadd.f32 %v1091, %v1354
    %v1356 = vpop.f32.mrb[0].mxu0
    %v1357 = vpop.f32.mrb[0].mxu0
    %v1358 = vadd.f32 %v1091, %v1357
    %v1359 = vpop.f32.mrb[0].mxu0
    %1360 = vdwg.mxu0
    %1361 = vst [vmem:[#allocation2] sm:$0xff] %v1258
    %1362 = vst [vmem:[#allocation2 + $0x8] sm:$0xff] %v1260
    %1363 = vst [vmem:[#allocation2 + $0x10] sm:$0xff] %v1331
    %1364 = vst [vmem:[#allocation2 + $0x18] sm:$0xff] %v1262
    %1365 = vst [vmem:[#allocation2 + $0x20] sm:$0xff] %v1264
    %1366 = vst [vmem:[#allocation2 + $0x28] sm:$0xff] %v1334
    %1367 = vst [vmem:[#allocation2 + $0x30] sm:$0xff] %v1268
    %1368 = vst [vmem:[#allocation2 + $0x38] sm:$0xff] %v1270
    %1369 = vst [vmem:[#allocation2 + $0x40] sm:$0xff] %v1339
    %1370 = vst [vmem:[#allocation2 + $0x48] sm:$0xff] %v1272
    %1371 = vst [vmem:[#allocation2 + $0x50] sm:$0xff] %v1274
    %1372 = vst [vmem:[#allocation2 + $0x58] sm:$0xff] %v1342
    %1373 = vst [vmem:[#allocation2 + $0x60] sm:$0xff] %v1278
    %1374 = vst [vmem:[#allocation2 + $0x68] sm:$0xff] %v1280
    %1375 = vst [vmem:[#allocation2 + $0x70] sm:$0xff] %v1347
    %1376 = vst [vmem:[#allocation2 + $0x78] sm:$0xff] %v1282
    %1377 = vst [vmem:[#allocation2 + $0x80] sm:$0xff] %v1284
    %1378 = vst [vmem:[#allocation2 + $0x88] sm:$0xff] %v1350
    %1379 = vst [vmem:[#allocation2 + $0x90] sm:$0xff] %v1288
    %1380 = vst [vmem:[#allocation2 + $0x98] sm:$0xff] %v1290
    %1381 = vst [vmem:[#allocation2 + $0xa0] sm:$0xff] %v1355
    %1382 = vst [vmem:[#allocation2 + $0xa8] sm:$0xff] %v1292
    %1383 = vst [vmem:[#allocation2 + $0xb0] sm:$0xff] %v1294
    %1384 = vst [vmem:[#allocation2 + $0xb8] sm:$0xff] %v1358
    %v1385 = vld [vmem:[#allocation8] sm:$0xff]
    %v1386 = vld [vmem:[#allocation8 + $0x8] sm:$0xf]
    %v1387 = vld [vmem:[#allocation8 + $0xc] sm:$0xff]
    %v1388 = vld [vmem:[#allocation8 + $0x14] sm:$0xf]
    %v1389 = vld [vmem:[#allocation8 + $0x18] sm:$0xff]
    %v1390 = vld [vmem:[#allocation8 + $0x20] sm:$0xf]
    %v1391 = vld [vmem:[#allocation8 + $0x24] sm:$0xff]
    %v1392 = vld [vmem:[#allocation8 + $0x2c] sm:$0xf]
    %v1393 = vld [vmem:[#allocation8 + $0x30] sm:$0xff]
    %v1394 = vld [vmem:[#allocation8 + $0x38] sm:$0xf]
    %v1395 = vld [vmem:[#allocation8 + $0x3c] sm:$0xff]
    %v1396 = vld [vmem:[#allocation8 + $0x44] sm:$0xf]
    %v1397 = vld [vmem:[#allocation8 + $0x48] sm:$0xff]
    %v1398 = vld [vmem:[#allocation8 + $0x50] sm:$0xf]
    %v1399 = vld [vmem:[#allocation8 + $0x54] sm:$0xff]
    %v1400 = vld [vmem:[#allocation8 + $0x5c] sm:$0xf]
    %v1401 = vld [vmem:[#allocation8 + $0x60] sm:$0xff]
    %v1402 = vld [vmem:[#allocation8 + $0x68] sm:$0xf]
    %v1403 = vld [vmem:[#allocation8 + $0x6c] sm:$0xff]
    %v1404 = vld [vmem:[#allocation8 + $0x74] sm:$0xf]
    %v1405 = vld [vmem:[#allocation8 + $0x78] sm:$0xff]
    %v1406 = vld [vmem:[#allocation8 + $0x80] sm:$0xf]
    %v1407 = vld [vmem:[#allocation8 + $0x84] sm:$0xff]
    %v1408 = vld [vmem:[#allocation8 + $0x8c] sm:$0xf]
    %v1409 = vld [vmem:[#allocation8 + $0x90] sm:$0xff]
    %v1410 = vld [vmem:[#allocation8 + $0x98] sm:$0xf]
    %v1411 = vld [vmem:[#allocation8 + $0x9c] sm:$0xff]
    %v1412 = vld [vmem:[#allocation8 + $0xa4] sm:$0xf]
    %v1413 = vld [vmem:[#allocation8 + $0xa8] sm:$0xff]
    %v1414 = vld [vmem:[#allocation8 + $0xb0] sm:$0xf]
    %v1415 = vld [vmem:[#allocation8 + $0xb4] sm:$0xff]
    %v1416 = vld [vmem:[#allocation8 + $0xbc] sm:$0xf]
    %v1417 = vld [vmem:[%s8] sm:$0x1]
    %v1419 = vlaneseq
    %v1420 = vshrl.u32 %v1419, 7
    %v1421 = vsub.s32 0, %v1420
    %v1422 = vrot.slane %v1417, %v1421
    %v1456 = vunpack.c.l.b16 %v1385
    %v1457 = vunpack.c.h.b16 %v1385
    %v1458 = vunpack.c.l.b16 %v1386
    %v1459 = vunpack.c.l.b16 %v1387
    %v1460 = vunpack.c.h.b16 %v1387
    %v1461 = vunpack.c.l.b16 %v1388
    %v1462 = vunpack.c.l.b16 %v1389
    %v1463 = vunpack.c.h.b16 %v1389
    %v1464 = vunpack.c.l.b16 %v1390
    %v1465 = vunpack.c.l.b16 %v1391
    %v1466 = vunpack.c.h.b16 %v1391
    %v1467 = vunpack.c.l.b16 %v1392
    %v1468 = vunpack.c.l.b16 %v1393
    %v1469 = vunpack.c.h.b16 %v1393
    %v1470 = vunpack.c.l.b16 %v1394
    %v1471 = vunpack.c.l.b16 %v1395
    %v1472 = vunpack.c.h.b16 %v1395
    %v1473 = vunpack.c.l.b16 %v1396
    %v1474 = vunpack.c.l.b16 %v1397
    %v1475 = vunpack.c.h.b16 %v1397
    %v1476 = vunpack.c.l.b16 %v1398
    %v1477 = vunpack.c.l.b16 %v1399
    %v1478 = vunpack.c.h.b16 %v1399
    %v1479 = vunpack.c.l.b16 %v1400
    %v1480 = vunpack.c.l.b16 %v1401
    %v1481 = vunpack.c.h.b16 %v1401
    %v1482 = vunpack.c.l.b16 %v1402
    %v1483 = vunpack.c.l.b16 %v1403
    %v1484 = vunpack.c.h.b16 %v1403
    %v1485 = vunpack.c.l.b16 %v1404
    %v1486 = vunpack.c.l.b16 %v1405
    %v1487 = vunpack.c.h.b16 %v1405
    %v1488 = vunpack.c.l.b16 %v1406
    %v1489 = vunpack.c.l.b16 %v1407
    %v1490 = vunpack.c.h.b16 %v1407
    %v1491 = vunpack.c.l.b16 %v1408
    %v1492 = vunpack.c.l.b16 %v1409
    %v1493 = vunpack.c.h.b16 %v1409
    %v1494 = vunpack.c.l.b16 %v1410
    %v1495 = vunpack.c.l.b16 %v1411
    %v1496 = vunpack.c.h.b16 %v1411
    %v1497 = vunpack.c.l.b16 %v1412
    %v1498 = vunpack.c.l.b16 %v1413
    %v1499 = vunpack.c.h.b16 %v1413
    %v1500 = vunpack.c.l.b16 %v1414
    %v1501 = vunpack.c.l.b16 %v1415
    %v1502 = vunpack.c.h.b16 %v1415
    %v1503 = vunpack.c.l.b16 %v1416
    %v1504 = vpack.c.b16 %v1459, %v1456
    %v1505 = vpack.c.b16 %v1460, %v1457
    %v1506 = vpack.c.b16 %v1461, %v1458
    %v1507 = vpack.c.b16 %v1465, %v1462
    %v1508 = vpack.c.b16 %v1466, %v1463
    %v1509 = vpack.c.b16 %v1467, %v1464
    %v1510 = vpack.c.b16 %v1471, %v1468
    %v1511 = vpack.c.b16 %v1472, %v1469
    %v1512 = vpack.c.b16 %v1473, %v1470
    %v1513 = vpack.c.b16 %v1477, %v1474
    %v1514 = vpack.c.b16 %v1478, %v1475
    %v1515 = vpack.c.b16 %v1479, %v1476
    %v1516 = vpack.c.b16 %v1483, %v1480
    %v1517 = vpack.c.b16 %v1484, %v1481
    %v1518 = vpack.c.b16 %v1485, %v1482
    %v1519 = vpack.c.b16 %v1489, %v1486
    %v1520 = vpack.c.b16 %v1490, %v1487
    %v1521 = vpack.c.b16 %v1491, %v1488
    %v1522 = vpack.c.b16 %v1495, %v1492
    %v1523 = vpack.c.b16 %v1496, %v1493
    %v1524 = vpack.c.b16 %v1497, %v1494
    %v1525 = vpack.c.b16 %v1501, %v1498
    %v1526 = vpack.c.b16 %v1502, %v1499
    %v1527 = vpack.c.b16 %v1503, %v1500
    %1552 = vmatprep.subr.bf16.mxu0 %v1505
    %1553 = vmatpush1.bf16.msra.mxu0 %v1504
    %1554 = vmatprep.subr.bf16.mxu0 %v1508
    %1555 = vmatpush1.bf16.msra.mxu0 %v1507
    %1556 = vmatprep.subr.bf16.mxu0 %v1511
    %1557 = vmatpush1.bf16.msra.mxu0 %v1510
    %1558 = vmatprep.subr.bf16.mxu0 %v1514
    %1559 = vmatpush1.bf16.msra.mxu0 %v1513
    %1560 = vmatprep.subr.bf16.mxu0 %v1517
    %1561 = vmatpush1.bf16.msra.mxu0 %v1516
    %1562 = vmatprep.subr.bf16.mxu0 %v1520
    %1563 = vmatpush1.bf16.msra.mxu0 %v1519
    %1564 = vmatprep.subr.bf16.mxu0 %v1523
    %1565 = vmatpush1.bf16.msra.mxu0 %v1522
    %1566 = vmatprep.subr.bf16.mxu0 %v1526
    %1567 = vmatpush1.bf16.msra.mxu0 %v1525
    %1568 = vmatprep.subr.bf16.mxu0 0
    %1569 = vmatpush1.bf16.msra.mxu0 0
    %1570 = vmatprep.subr.bf16.mxu0 0
    %1571 = vmatpush1.bf16.msra.mxu0 0
    %1572 = vmatprep.subr.bf16.mxu0 0
    %1573 = vmatpush1.bf16.msra.mxu0 0
    %1574 = vmatprep.subr.bf16.mxu0 0
    %1575 = vmatpush1.bf16.msra.mxu0 0
    %1576 = vmatprep.subr.bf16.mxu0 0
    %1577 = vmatpush1.bf16.msra.mxu0 0
    %1578 = vmatprep.subr.bf16.mxu0 0
    %1579 = vmatpush1.bf16.msra.mxu0 0
    %1580 = vmatprep.subr.bf16.mxu0 0
    %1581 = vmatpush1.bf16.msra.mxu0 0
    %1582 = vmatprep.subr.bf16.mxu0 0
    %1583 = vmatpush1.bf16.msra.mxu0 0
    %1584 = vmatprep.mubr.bf16.mxu0 0
    %1585 = vmatmul.mubr.bf16.gmra.mrb[0].mxu0 0
    %v1586 = vpop.f32.mrb[0].mxu0
    %v1587 = vadd.f32 0.0, %v1586
    %v1588 = vpop.f32.mrb[0].mxu0
    %v1589 = vadd.f32 0.0, %v1588
    %v1590 = vpop.f32.mrb[0].mxu0
    %v1591 = vadd.f32 0.0, %v1590
    %v1592 = vpop.f32.mrb[0].mxu0
    %v1593 = vadd.f32 0.0, %v1592
    %1594 = vdwg.mxu0
    %1595 = vmatprep.subr.bf16.mxu0 0
    %1596 = vmatpush1.bf16.msra.mxu0 %v1506
    %1597 = vmatprep.subr.bf16.mxu0 0
    %1598 = vmatpush1.bf16.msra.mxu0 %v1509
    %1599 = vmatprep.subr.bf16.mxu0 0
    %1600 = vmatpush1.bf16.msra.mxu0 %v1512
    %1601 = vmatprep.subr.bf16.mxu0 0
    %1602 = vmatpush1.bf16.msra.mxu0 %v1515
    %1603 = vmatprep.subr.bf16.mxu0 0
    %1604 = vmatpush1.bf16.msra.mxu0 %v1518
    %1605 = vmatprep.subr.bf16.mxu0 0
    %1606 = vmatpush1.bf16.msra.mxu0 %v1521
    %1607 = vmatprep.subr.bf16.mxu0 0
    %1608 = vmatpush1.bf16.msra.mxu0 %v1524
    %1609 = vmatprep.subr.bf16.mxu0 0
    %1610 = vmatpush1.bf16.msra.mxu0 %v1527
    %1611 = vmatprep.subr.bf16.mxu0 0
    %1612 = vmatpush1.bf16.msra.mxu0 0
    %1613 = vmatprep.subr.bf16.mxu0 0
    %1614 = vmatpush1.bf16.msra.mxu0 0
    %1615 = vmatprep.subr.bf16.mxu0 0
    %1616 = vmatpush1.bf16.msra.mxu0 0
    %1617 = vmatprep.subr.bf16.mxu0 0
    %1618 = vmatpush1.bf16.msra.mxu0 0
    %1619 = vmatprep.subr.bf16.mxu0 0
    %1620 = vmatpush1.bf16.msra.mxu0 0
    %1621 = vmatprep.subr.bf16.mxu0 0
    %1622 = vmatpush1.bf16.msra.mxu0 0
    %1623 = vmatprep.subr.bf16.mxu0 0
    %1624 = vmatpush1.bf16.msra.mxu0 0
    %1625 = vmatprep.subr.bf16.mxu0 0
    %1626 = vmatpush1.bf16.msra.mxu0 0
    %1627 = vmatprep.mubr.bf16.mxu0 0
    %1628 = vmatmul.mubr.bf16.gmra.mrb[0].mxu0 0
    %v1629 = vpop.f32.mrb[0].mxu0
    %v1630 = vadd.f32 0.0, %v1629
    %v1631 = vpop.f32.mrb[0].mxu0
    %v1632 = vpop.f32.mrb[0].mxu0
    %v1633 = vadd.f32 0.0, %v1632
    %v1634 = vpop.f32.mrb[0].mxu0
    %1635 = vdwg.mxu0
    %v1636 = vld [vmem:[#allocation2] sm:$0xff]
    %v1637 = vld [vmem:[#allocation2 + $0x8] sm:$0xff]
    %v1638 = vld [vmem:[#allocation2 + $0x10] sm:$0xff]
    %v1639 = vld [vmem:[#allocation2 + $0x18] sm:$0xff]
    %v1640 = vld [vmem:[#allocation2 + $0x20] sm:$0xff]
    %v1641 = vld [vmem:[#allocation2 + $0x28] sm:$0xff]
    %v1642 = vadd.f32 %v1636, %v1587
    %v1643 = vadd.f32 %v1639, %v1591
    %v1644 = vxor.u32 %v1642, 2147483648
    %v1645 = vxor.u32 %v1643, 2147483648
    %v1646 = vmul.f32 %v1644, 1.442695
    %v1647 = vpow.pop %v1646
    %v1648 = vmul.f32 %v1645, 1.442695
    %v1649 = vpow.pop %v1648
    %v1650 = vadd.f32 %v1647, 1.0
    %v1651 = vadd.f32 %v1649, 1.0
    %v1652 = vrcp.pop %v1650
    %v1653 = vmul.f32 1.0, %v1652
    %v1654 = vrcp.pop %v1651
    %v1655 = vmul.f32 1.0, %v1654
    %v1656 = vadd.f32 %v1637, %v1589
    %v1657 = vadd.f32 %v1640, %v1593
    %v1658 = vxor.u32 %v1656, 2147483648
    %v1659 = vxor.u32 %v1657, 2147483648
    %v1660 = vmul.f32 %v1658, 1.442695
    %v1661 = vpow.pop %v1660
    %v1662 = vmul.f32 %v1659, 1.442695
    %v1663 = vpow.pop %v1662
    %v1664 = vadd.f32 %v1661, 1.0
    %v1665 = vadd.f32 %v1663, 1.0
    %v1666 = vrcp.pop %v1664
    %v1667 = vmul.f32 1.0, %v1666
    %v1668 = vrcp.pop %v1665
    %v1669 = vmul.f32 1.0, %v1668
    %v1670 = vadd.f32 %v1630, %v1422
    %v1671 = vadd.f32 %v1633, %v1422
    %v1672 = vmul.f32 %v1653, %v1670
    %v1673 = vmul.f32 %v1655, %v1671
    %v1674 = vadd.f32 %v1638, %v1672
    %v1675 = vadd.f32 %v1641, %v1673
    %v1676 = vtanh.pop %v1674
    %v1677 = vtanh.pop %v1675
    %v1678 = vsub.f32 1.0, %v1667
    %v1679 = vsub.f32 1.0, %v1669
    %v1680 = vmul.f32 %v1678, %v1676
    %v1681 = vmul.f32 %v1679, %v1677
    %v1682 = vmul.f32 %v1667, 0.0
    %v1683 = vmul.f32 %v1669, 0.0
    %v1684 = vadd.f32 %v1680, %v1682
    %v1685 = vadd.f32 %v1681, %v1683
    %1686 = vst [vmem:[%s9] sm:$0xff] %v1684
    %1687 = vst [vmem:[%s9 + $0x8] sm:$0xff] %v1685
    %v1688 = vpack.c.bf16 %v1685, %v1684
    %1689 = vmatprep.subr.bf16.mxu0 %v1505
    %1690 = vmatpush1.bf16.msra.mxu0 %v1504
    %1691 = vmatprep.subr.bf16.mxu0 %v1508
    %1692 = vmatpush1.bf16.msra.mxu0 %v1507
    %1693 = vmatprep.subr.bf16.mxu0 %v1511
    %1694 = vmatpush1.bf16.msra.mxu0 %v1510
    %1695 = vmatprep.subr.bf16.mxu0 %v1514
    %1696 = vmatpush1.bf16.msra.mxu0 %v1513
    %1697 = vmatprep.subr.bf16.mxu0 %v1517
    %1698 = vmatpush1.bf16.msra.mxu0 %v1516
    %1699 = vmatprep.subr.bf16.mxu0 %v1520
    %1700 = vmatpush1.bf16.msra.mxu0 %v1519
    %1701 = vmatprep.subr.bf16.mxu0 %v1523
    %1702 = vmatpush1.bf16.msra.mxu0 %v1522
    %1703 = vmatprep.subr.bf16.mxu0 %v1526
    %1704 = vmatpush1.bf16.msra.mxu0 %v1525
    %1705 = vmatprep.subr.bf16.mxu0 0
    %1706 = vmatpush1.bf16.msra.mxu0 0
    %1707 = vmatprep.subr.bf16.mxu0 0
    %1708 = vmatpush1.bf16.msra.mxu0 0
    %1709 = vmatprep.subr.bf16.mxu0 0
    %1710 = vmatpush1.bf16.msra.mxu0 0
    %1711 = vmatprep.subr.bf16.mxu0 0
    %1712 = vmatpush1.bf16.msra.mxu0 0
    %1713 = vmatprep.subr.bf16.mxu0 0
    %1714 = vmatpush1.bf16.msra.mxu0 0
    %1715 = vmatprep.subr.bf16.mxu0 0
    %1716 = vmatpush1.bf16.msra.mxu0 0
    %1717 = vmatprep.subr.bf16.mxu0 0
    %1718 = vmatpush1.bf16.msra.mxu0 0
    %1719 = vmatprep.subr.bf16.mxu0 0
    %1720 = vmatpush1.bf16.msra.mxu0 0
    %1721 = vmatprep.mubr.bf16.mxu0 0
    %1722 = vmatmul.mubr.bf16.gmra.mrb[0].mxu0 %v1688
    %v1723 = vpop.f32.mrb[0].mxu0
    %v1724 = vadd.f32 0.0, %v1723
    %v1725 = vpop.f32.mrb[0].mxu0
    %v1726 = vadd.f32 0.0, %v1725
    %v1727 = vpop.f32.mrb[0].mxu0
    %v1728 = vadd.f32 0.0, %v1727
    %v1729 = vpop.f32.mrb[0].mxu0
    %v1730 = vadd.f32 0.0, %v1729
    %1731 = vdwg.mxu0
    %1732 = vmatprep.subr.bf16.mxu0 0
    %1733 = vmatpush1.bf16.msra.mxu0 %v1506
    %1734 = vmatprep.subr.bf16.mxu0 0
    %1735 = vmatpush1.bf16.msra.mxu0 %v1509
    %1736 = vmatprep.subr.bf16.mxu0 0
    %1737 = vmatpush1.bf16.msra.mxu0 %v1512
    %1738 = vmatprep.subr.bf16.mxu0 0
    %1739 = vmatpush1.bf16.msra.mxu0 %v1515
    %1740 = vmatprep.subr.bf16.mxu0 0
    %1741 = vmatpush1.bf16.msra.mxu0 %v1518
    %1742 = vmatprep.subr.bf16.mxu0 0
    %1743 = vmatpush1.bf16.msra.mxu0 %v1521
    %1744 = vmatprep.subr.bf16.mxu0 0
    %1745 = vmatpush1.bf16.msra.mxu0 %v1524
    %1746 = vmatprep.subr.bf16.mxu0 0
    %1747 = vmatpush1.bf16.msra.mxu0 %v1527
    %1748 = vmatprep.subr.bf16.mxu0 0
    %1749 = vmatpush1.bf16.msra.mxu0 0
    %1750 = vmatprep.subr.bf16.mxu0 0
    %1751 = vmatpush1.bf16.msra.mxu0 0
    %1752 = vmatprep.subr.bf16.mxu0 0
    %1753 = vmatpush1.bf16.msra.mxu0 0
    %1754 = vmatprep.subr.bf16.mxu0 0
    %1755 = vmatpush1.bf16.msra.mxu0 0
    %1756 = vmatprep.subr.bf16.mxu0 0
    %1757 = vmatpush1.bf16.msra.mxu0 0
    %1758 = vmatprep.subr.bf16.mxu0 0
    %1759 = vmatpush1.bf16.msra.mxu0 0
    %1760 = vmatprep.subr.bf16.mxu0 0
    %1761 = vmatpush1.bf16.msra.mxu0 0
    %1762 = vmatprep.subr.bf16.mxu0 0
    %1763 = vmatpush1.bf16.msra.mxu0 0
    %1764 = vmatprep.mubr.bf16.mxu0 0
    %1765 = vmatmul.mubr.bf16.gmra.mrb[0].mxu0 %v1688
    %v1766 = vpop.f32.mrb[0].mxu0
    %v1767 = vadd.f32 0.0, %v1766
    %v1768 = vpop.f32.mrb[0].mxu0
    %v1769 = vpop.f32.mrb[0].mxu0
    %v1770 = vadd.f32 0.0, %v1769
    %v1771 = vpop.f32.mrb[0].mxu0
    %1772 = vdwg.mxu0
    %v1773 = vld [vmem:[%s702] sm:$0xff]
    %v1774 = vld [vmem:[%s702 + $0x8] sm:$0xff]
    %v1775 = vld [vmem:[%s702 + $0x10] sm:$0xff]
    %v1776 = vld [vmem:[%s702 + $0x18] sm:$0xff]
    %v1777 = vld [vmem:[%s702 + $0x20] sm:$0xff]
    %v1778 = vld [vmem:[%s702 + $0x28] sm:$0xff]
    %v1779 = vadd.f32 %v1773, %v1724
    %v1780 = vadd.f32 %v1776, %v1728
    %v1781 = vxor.u32 %v1779, 2147483648
    %v1782 = vxor.u32 %v1780, 2147483648
    %v1783 = vmul.f32 %v1781, 1.442695
    %v1784 = vpow.pop %v1783
    %v1785 = vmul.f32 %v1782, 1.442695
    %v1786 = vpow.pop %v1785
    %v1787 = vadd.f32 %v1784, 1.0
    %v1788 = vadd.f32 %v1786, 1.0
    %v1789 = vrcp.pop %v1787
    %v1790 = vmul.f32 1.0, %v1789
    %v1791 = vrcp.pop %v1788
    %v1792 = vmul.f32 1.0, %v1791
    %v1793 = vadd.f32 %v1774, %v1726
    %v1794 = vadd.f32 %v1777, %v1730
    %v1795 = vxor.u32 %v1793, 2147483648
    %v1796 = vxor.u32 %v1794, 2147483648
    %v1797 = vmul.f32 %v1795, 1.442695
    %v1798 = vpow.pop %v1797
    %v1799 = vmul.f32 %v1796, 1.442695
    %v1800 = vpow.pop %v1799
    %v1801 = vadd.f32 %v1798, 1.0
    %v1802 = vadd.f32 %v1800, 1.0
    %v1803 = vrcp.pop %v1801
    %v1804 = vmul.f32 1.0, %v1803
    %v1805 = vrcp.pop %v1802
    %v1806 = vmul.f32 1.0, %v1805
    %v1807 = vadd.f32 %v1767, %v1422
    %v1808 = vadd.f32 %v1770, %v1422
    %v1809 = vmul.f32 %v1790, %v1807
    %v1810 = vmul.f32 %v1792, %v1808
    %v1811 = vadd.f32 %v1775, %v1809
    %v1812 = vadd.f32 %v1778, %v1810
    %v1813 = vtanh.pop %v1811
    %v1814 = vtanh.pop %v1812
    %v1815 = vsub.f32 1.0, %v1804
    %v1816 = vsub.f32 1.0, %v1806
    %v1817 = vmul.f32 %v1815, %v1813
    %v1818 = vmul.f32 %v1816, %v1814
    %v1819 = vmul.f32 %v1804, %v1684
    %v1820 = vmul.f32 %v1806, %v1685
    %v1821 = vadd.f32 %v1817, %v1819
    %v1822 = vadd.f32 %v1818, %v1820
    %s1823 = scalar_lea.vmem %s9, 16
    %1824 = vst [vmem:[%s1823] sm:$0xff] %v1821
    %1825 = vst [vmem:[%s1823 + $0x8] sm:$0xff] %v1822
    %v1826 = vpack.c.bf16 %v1822, %v1821
    %1827 = vmatprep.subr.bf16.mxu0 %v1505
    %1828 = vmatpush1.bf16.msra.mxu0 %v1504
    %1829 = vmatprep.subr.bf16.mxu0 %v1508
    %1830 = vmatpush1.bf16.msra.mxu0 %v1507
    %1831 = vmatprep.subr.bf16.mxu0 %v1511
    %1832 = vmatpush1.bf16.msra.mxu0 %v1510
    %1833 = vmatprep.subr.bf16.mxu0 %v1514
    %1834 = vmatpush1.bf16.msra.mxu0 %v1513
    %1835 = vmatprep.subr.bf16.mxu0 %v1517
    %1836 = vmatpush1.bf16.msra.mxu0 %v1516
    %1837 = vmatprep.subr.bf16.mxu0 %v1520
    %1838 = vmatpush1.bf16.msra.mxu0 %v1519
    %1839 = vmatprep.subr.bf16.mxu0 %v1523
    %1840 = vmatpush1.bf16.msra.mxu0 %v1522
    %1841 = vmatprep.subr.bf16.mxu0 %v1526
    %1842 = vmatpush1.bf16.msra.mxu0 %v1525
    %1843 = vmatprep.subr.bf16.mxu0 0
    %1844 = vmatpush1.bf16.msra.mxu0 0
    %1845 = vmatprep.subr.bf16.mxu0 0
    %1846 = vmatpush1.bf16.msra.mxu0 0
    %1847 = vmatprep.subr.bf16.mxu0 0
    %1848 = vmatpush1.bf16.msra.mxu0 0
    %1849 = vmatprep.subr.bf16.mxu0 0
    %1850 = vmatpush1.bf16.msra.mxu0 0
    %1851 = vmatprep.subr.bf16.mxu0 0
    %1852 = vmatpush1.bf16.msra.mxu0 0
    %1853 = vmatprep.subr.bf16.mxu0 0
    %1854 = vmatpush1.bf16.msra.mxu0 0
    %1855 = vmatprep.subr.bf16.mxu0 0
    %1856 = vmatpush1.bf16.msra.mxu0 0
    %1857 = vmatprep.subr.bf16.mxu0 0
    %1858 = vmatpush1.bf16.msra.mxu0 0
    %1859 = vmatprep.mubr.bf16.mxu0 0
    %1860 = vmatmul.mubr.bf16.gmra.mrb[0].mxu0 %v1826
    %v1861 = vpop.f32.mrb[0].mxu0
    %v1862 = vadd.f32 0.0, %v1861
    %v1863 = vpop.f32.mrb[0].mxu0
    %v1864 = vadd.f32 0.0, %v1863
    %v1865 = vpop.f32.mrb[0].mxu0
    %v1866 = vadd.f32 0.0, %v1865
    %v1867 = vpop.f32.mrb[0].mxu0
    %v1868 = vadd.f32 0.0, %v1867
    %1869 = vdwg.mxu0
    %1870 = vmatprep.subr.bf16.mxu0 0
    %1871 = vmatpush1.bf16.msra.mxu0 %v1506
    %1872 = vmatprep.subr.bf16.mxu0 0
    %1873 = vmatpush1.bf16.msra.mxu0 %v1509
    %1874 = vmatprep.subr.bf16.mxu0 0
    %1875 = vmatpush1.bf16.msra.mxu0 %v1512
    %1876 = vmatprep.subr.bf16.mxu0 0
    %1877 = vmatpush1.bf16.msra.mxu0 %v1515
    %1878 = vmatprep.subr.bf16.mxu0 0
    %1879 = vmatpush1.bf16.msra.mxu0 %v1518
    %1880 = vmatprep.subr.bf16.mxu0 0
    %1881 = vmatpush1.bf16.msra.mxu0 %v1521
    %1882 = vmatprep.subr.bf16.mxu0 0
    %1883 = vmatpush1.bf16.msra.mxu0 %v1524
    %1884 = vmatprep.subr.bf16.mxu0 0
    %1885 = vmatpush1.bf16.msra.mxu0 %v1527
    %1886 = vmatprep.subr.bf16.mxu0 0
    %1887 = vmatpush1.bf16.msra.mxu0 0
    %1888 = vmatprep.subr.bf16.mxu0 0
    %1889 = vmatpush1.bf16.msra.mxu0 0
    %1890 = vmatprep.subr.bf16.mxu0 0
    %1891 = vmatpush1.bf16.msra.mxu0 0
    %1892 = vmatprep.subr.bf16.mxu0 0
    %1893 = vmatpush1.bf16.msra.mxu0 0
    %1894 = vmatprep.subr.bf16.mxu0 0
    %1895 = vmatpush1.bf16.msra.mxu0 0
    %1896 = vmatprep.subr.bf16.mxu0 0
    %1897 = vmatpush1.bf16.msra.mxu0 0
    %1898 = vmatprep.subr.bf16.mxu0 0
    %1899 = vmatpush1.bf16.msra.mxu0 0
    %1900 = vmatprep.subr.bf16.mxu0 0
    %1901 = vmatpush1.bf16.msra.mxu0 0
    %1902 = vmatprep.mubr.bf16.mxu0 0
    %1903 = vmatmul.mubr.bf16.gmra.mrb[0].mxu0 %v1826
    %v1904 = vpop.f32.mrb[0].mxu0
    %v1905 = vadd.f32 0.0, %v1904
    %v1906 = vpop.f32.mrb[0].mxu0
    %v1907 = vpop.f32.mrb[0].mxu0
    %v1908 = vadd.f32 0.0, %v1907
    %v1909 = vpop.f32.mrb[0].mxu0
    %1910 = vdwg.mxu0
    %v1911 = vld [vmem:[%s841] sm:$0xff]
    %v1912 = vld [vmem:[%s841 + $0x8] sm:$0xff]
    %v1913 = vld [vmem:[%s841 + $0x10] sm:$0xff]
    %v1914 = vld [vmem:[%s841 + $0x18] sm:$0xff]
    %v1915 = vld [vmem:[%s841 + $0x20] sm:$0xff]
    %v1916 = vld [vmem:[%s841 + $0x28] sm:$0xff]
    %v1917 = vadd.f32 %v1911, %v1862
    %v1918 = vadd.f32 %v1914, %v1866
    %v1919 = vxor.u32 %v1917, 2147483648
    %v1920 = vxor.u32 %v1918, 2147483648
    %v1921 = vmul.f32 %v1919, 1.442695
    %v1922 = vpow.pop %v1921
    %v1923 = vmul.f32 %v1920, 1.442695
    %v1924 = vpow.pop %v1923
    %v1925 = vadd.f32 %v1922, 1.0
    %v1926 = vadd.f32 %v1924, 1.0
    %v1927 = vrcp.pop %v1925
    %v1928 = vmul.f32 1.0, %v1927
    %v1929 = vrcp.pop %v1926
    %v1930 = vmul.f32 1.0, %v1929
    %v1931 = vadd.f32 %v1912, %v1864
    %v1932 = vadd.f32 %v1915, %v1868
    %v1933 = vxor.u32 %v1931, 2147483648
    %v1934 = vxor.u32 %v1932, 2147483648
    %v1935 = vmul.f32 %v1933, 1.442695
    %v1936 = vpow.pop %v1935
    %v1937 = vmul.f32 %v1934, 1.442695
    %v1938 = vpow.pop %v1937
    %v1939 = vadd.f32 %v1936, 1.0
    %v1940 = vadd.f32 %v1938, 1.0
    %v1941 = vrcp.pop %v1939
    %v1942 = vmul.f32 1.0, %v1941
    %v1943 = vrcp.pop %v1940
    %v1944 = vmul.f32 1.0, %v1943
    %v1945 = vadd.f32 %v1905, %v1422
    %v1946 = vadd.f32 %v1908, %v1422
    %v1947 = vmul.f32 %v1928, %v1945
    %v1948 = vmul.f32 %v1930, %v1946
    %v1949 = vadd.f32 %v1913, %v1947
    %v1950 = vadd.f32 %v1916, %v1948
    %v1951 = vtanh.pop %v1949
    %v1952 = vtanh.pop %v1950
    %v1953 = vsub.f32 1.0, %v1942
    %v1954 = vsub.f32 1.0, %v1944
    %v1955 = vmul.f32 %v1953, %v1951
    %v1956 = vmul.f32 %v1954, %v1952
    %v1957 = vmul.f32 %v1942, %v1821
    %v1958 = vmul.f32 %v1944, %v1822
    %v1959 = vadd.f32 %v1955, %v1957
    %v1960 = vadd.f32 %v1956, %v1958
    %s1961 = scalar_lea.vmem %s9, 32
    %1962 = vst [vmem:[%s1961] sm:$0xff] %v1959
    %1963 = vst [vmem:[%s1961 + $0x8] sm:$0xff] %v1960
    %v1964 = vpack.c.bf16 %v1960, %v1959
    %1965 = vmatprep.subr.bf16.mxu0 %v1505
    %1966 = vmatpush1.bf16.msra.mxu0 %v1504
    %1967 = vmatprep.subr.bf16.mxu0 %v1508
    %1968 = vmatpush1.bf16.msra.mxu0 %v1507
    %1969 = vmatprep.subr.bf16.mxu0 %v1511
    %1970 = vmatpush1.bf16.msra.mxu0 %v1510
    %1971 = vmatprep.subr.bf16.mxu0 %v1514
    %1972 = vmatpush1.bf16.msra.mxu0 %v1513
    %1973 = vmatprep.subr.bf16.mxu0 %v1517
    %1974 = vmatpush1.bf16.msra.mxu0 %v1516
    %1975 = vmatprep.subr.bf16.mxu0 %v1520
    %1976 = vmatpush1.bf16.msra.mxu0 %v1519
    %1977 = vmatprep.subr.bf16.mxu0 %v1523
    %1978 = vmatpush1.bf16.msra.mxu0 %v1522
    %1979 = vmatprep.subr.bf16.mxu0 %v1526
    %1980 = vmatpush1.bf16.msra.mxu0 %v1525
    %1981 = vmatprep.subr.bf16.mxu0 0
    %1982 = vmatpush1.bf16.msra.mxu0 0
    %1983 = vmatprep.subr.bf16.mxu0 0
    %1984 = vmatpush1.bf16.msra.mxu0 0
    %1985 = vmatprep.subr.bf16.mxu0 0
    %1986 = vmatpush1.bf16.msra.mxu0 0
    %1987 = vmatprep.subr.bf16.mxu0 0
    %1988 = vmatpush1.bf16.msra.mxu0 0
    %1989 = vmatprep.subr.bf16.mxu0 0
    %1990 = vmatpush1.bf16.msra.mxu0 0
    %1991 = vmatprep.subr.bf16.mxu0 0
    %1992 = vmatpush1.bf16.msra.mxu0 0
    %1993 = vmatprep.subr.bf16.mxu0 0
    %1994 = vmatpush1.bf16.msra.mxu0 0
    %1995 = vmatprep.subr.bf16.mxu0 0
    %1996 = vmatpush1.bf16.msra.mxu0 0
    %1997 = vmatprep.mubr.bf16.mxu0 0
    %1998 = vmatmul.mubr.bf16.gmra.mrb[0].mxu0 %v1964
    %v1999 = vpop.f32.mrb[0].mxu0
    %v2000 = vadd.f32 0.0, %v1999
    %v2001 = vpop.f32.mrb[0].mxu0
    %v2002 = vadd.f32 0.0, %v2001
    %v2003 = vpop.f32.mrb[0].mxu0
    %v2004 = vadd.f32 0.0, %v2003
    %v2005 = vpop.f32.mrb[0].mxu0
    %v2006 = vadd.f32 0.0, %v2005
    %2007 = vdwg.mxu0
    %2008 = vmatprep.subr.bf16.mxu0 0
    %2009 = vmatpush1.bf16.msra.mxu0 %v1506
    %2010 = vmatprep.subr.bf16.mxu0 0
    %2011 = vmatpush1.bf16.msra.mxu0 %v1509
    %2012 = vmatprep.subr.bf16.mxu0 0
    %2013 = vmatpush1.bf16.msra.mxu0 %v1512
    %2014 = vmatprep.subr.bf16.mxu0 0
    %2015 = vmatpush1.bf16.msra.mxu0 %v1515
    %2016 = vmatprep.subr.bf16.mxu0 0
    %2017 = vmatpush1.bf16.msra.mxu0 %v1518
    %2018 = vmatprep.subr.bf16.mxu0 0
    %2019 = vmatpush1.bf16.msra.mxu0 %v1521
    %2020 = vmatprep.subr.bf16.mxu0 0
    %2021 = vmatpush1.bf16.msra.mxu0 %v1524
    %2022 = vmatprep.subr.bf16.mxu0 0
    %2023 = vmatpush1.bf16.msra.mxu0 %v1527
    %2024 = vmatprep.subr.bf16.mxu0 0
    %2025 = vmatpush1.bf16.msra.mxu0 0
    %2026 = vmatprep.subr.bf16.mxu0 0
    %2027 = vmatpush1.bf16.msra.mxu0 0
    %2028 = vmatprep.subr.bf16.mxu0 0
    %2029 = vmatpush1.bf16.msra.mxu0 0
    %2030 = vmatprep.subr.bf16.mxu0 0
    %2031 = vmatpush1.bf16.msra.mxu0 0
    %2032 = vmatprep.subr.bf16.mxu0 0
    %2033 = vmatpush1.bf16.msra.mxu0 0
    %2034 = vmatprep.subr.bf16.mxu0 0
    %2035 = vmatpush1.bf16.msra.mxu0 0
    %2036 = vmatprep.subr.bf16.mxu0 0
    %2037 = vmatpush1.bf16.msra.mxu0 0
    %2038 = vmatprep.subr.bf16.mxu0 0
    %2039 = vmatpush1.bf16.msra.mxu0 0
    %2040 = vmatprep.mubr.bf16.mxu0 0
    %2041 = vmatmul.mubr.bf16.gmra.mrb[0].mxu0 %v1964
    %v2042 = vpop.f32.mrb[0].mxu0
    %v2043 = vadd.f32 0.0, %v2042
    %v2044 = vpop.f32.mrb[0].mxu0
    %v2045 = vpop.f32.mrb[0].mxu0
    %v2046 = vadd.f32 0.0, %v2045
    %v2047 = vpop.f32.mrb[0].mxu0
    %2048 = vdwg.mxu0
    %v2049 = vld [vmem:[%s980] sm:$0xff]
    %v2050 = vld [vmem:[%s980 + $0x8] sm:$0xff]
    %v2051 = vld [vmem:[%s980 + $0x10] sm:$0xff]
    %v2052 = vld [vmem:[%s980 + $0x18] sm:$0xff]
    %v2053 = vld [vmem:[%s980 + $0x20] sm:$0xff]
    %v2054 = vld [vmem:[%s980 + $0x28] sm:$0xff]
    %v2055 = vadd.f32 %v2049, %v2000
    %v2056 = vadd.f32 %v2052, %v2004
    %v2057 = vxor.u32 %v2055, 2147483648
    %v2058 = vxor.u32 %v2056, 2147483648
    %v2059 = vmul.f32 %v2057, 1.442695
    %v2060 = vpow.pop %v2059
    %v2061 = vmul.f32 %v2058, 1.442695
    %v2062 = vpow.pop %v2061
    %v2063 = vadd.f32 %v2060, 1.0
    %v2064 = vadd.f32 %v2062, 1.0
    %v2065 = vrcp.pop %v2063
    %v2066 = vmul.f32 1.0, %v2065
    %v2067 = vrcp.pop %v2064
    %v2068 = vmul.f32 1.0, %v2067
    %v2069 = vadd.f32 %v2050, %v2002
    %v2070 = vadd.f32 %v2053, %v2006
    %v2071 = vxor.u32 %v2069, 2147483648
    %v2072 = vxor.u32 %v2070, 2147483648
    %v2073 = vmul.f32 %v2071, 1.442695
    %v2074 = vpow.pop %v2073
    %v2075 = vmul.f32 %v2072, 1.442695
    %v2076 = vpow.pop %v2075
    %v2077 = vadd.f32 %v2074, 1.0
    %v2078 = vadd.f32 %v2076, 1.0
    %v2079 = vrcp.pop %v2077
    %v2080 = vmul.f32 1.0, %v2079
    %v2081 = vrcp.pop %v2078
    %v2082 = vmul.f32 1.0, %v2081
    %v2083 = vadd.f32 %v2043, %v1422
    %v2084 = vadd.f32 %v2046, %v1422
    %v2085 = vmul.f32 %v2066, %v2083
    %v2086 = vmul.f32 %v2068, %v2084
    %v2087 = vadd.f32 %v2051, %v2085
    %v2088 = vadd.f32 %v2054, %v2086
    %v2089 = vtanh.pop %v2087
    %v2090 = vtanh.pop %v2088
    %v2091 = vsub.f32 1.0, %v2080
    %v2092 = vsub.f32 1.0, %v2082
    %v2093 = vmul.f32 %v2091, %v2089
    %v2094 = vmul.f32 %v2092, %v2090
    %v2095 = vmul.f32 %v2080, %v1959
    %v2096 = vmul.f32 %v2082, %v1960
    %v2097 = vadd.f32 %v2093, %v2095
    %v2098 = vadd.f32 %v2094, %v2096
    %s2099 = scalar_lea.vmem %s9, 48
    %2100 = vst [vmem:[%s2099] sm:$0xff] %v2097
    %2101 = vst [vmem:[%s2099 + $0x8] sm:$0xff] %v2098
    // Predicated region
    $region50: #{model_forward.1} parent=1 // pred_check
      _
    $region51: #{model_forward.1} parent=1 // pred_check_branch
      %2103 = sbr.rel (0) target = $region53
    $region52: #{model_forward.1} parent=1 // pred_region
      _
    $region53: #{model_forward.1} parent=1 // pred_fallthru
      _
    // Predicated region
    $region54: #{model_forward.1} parent=1 // pred_check
      _
    $region55: #{model_forward.1} parent=1 // pred_check_branch
      %2105 = sbr.rel (0) target = $region57
    $region56: #{model_forward.1} parent=1 // pred_region
      _
    $region57: #{model_forward.1} parent=1 // pred_fallthru
      _
    %2106 = vsyncpa [#allocation5], 1
    %2107 = vsyncpa [#allocation7], 1

</llo_original>
